<compile_context>
chip_gen: v7x
topology: tpu7x:2x2x1
jax: 0.10.0
libtpu: 0.0.40
codegen_flags: <defaults>
</compile_context>

<pallas_src>
import functools
import math

import jax
import jax.numpy as jnp
from jax.experimental import pallas as pl
from jax.experimental.pallas import tpu as pltpu

LANE = 128


def _smoothed_distance(p, l, smoothing, dist_fn):
    """d = dist(pred - smoothed_label) / (1 - smoothing); trace-time specialised."""
    if smoothing == 0.0:
        diff = p - l
    else:
        # l in {0,1}:  0 -> s,  1 -> 1-s   (one FMA, no where)
        sl = jnp.float32(smoothing) + jnp.float32(1.0 - 2.0 * smoothing) * l
        diff = p - sl
    d = jnp.abs(diff) if dist_fn == "abs" else diff * diff
    if smoothing != 0.0:
        d = d * jnp.float32(1.0 / (1.0 - smoothing))
    return d


def _tversky_stream_kernel(pred_ref, label_ref, sl_ref, sd_ref, sdl_ref, *,
                           smoothing, dist_fn, n_valid, tn, groups, ragged):
    """One grid step: (bc_tile, 128) partial sums of l, d and d*l for one tile."""
    k = pl.program_id(1)
    num_k = pl.num_programs(1)
    rows = sl_ref.shape[0]
    chunk = groups * LANE
    num_chunks = tn // chunk

    # Partial sums live directly in the (rows, 128) output blocks (VMEM);
    # zero them once per grid step, RMW once per chunk below.
    sl_ref[...] = jnp.zeros_like(sl_ref)
    sd_ref[...] = jnp.zeros_like(sd_ref)
    sdl_ref[...] = jnp.zeros_like(sdl_ref)

    def make_chunk_body(masked):
        if masked:
            # Hoisted out of the loop (JAX does not CSE broadcast_in_dim).
            lane_iota = jax.lax.broadcasted_iota(jnp.int32, (rows, LANE), 1)
            limit = n_valid - k * tn          # valid lanes left in this tile

        def body(c, carry):
            tl = jnp.zeros((rows, LANE), jnp.float32)
            td = jnp.zeros((rows, LANE), jnp.float32)
            tdl = jnp.zeros((rows, LANE), jnp.float32)
            for g in range(groups):                      # short static unroll
                off = pl.multiple_of(c * chunk + g * LANE, LANE)
                p = pred_ref[:, pl.ds(off, LANE)].astype(jnp.float32)
                l = label_ref[:, pl.ds(off, LANE)].astype(jnp.float32)
                d = _smoothed_distance(p, l, smoothing, dist_fn)
                if masked:
                    # Select-based masking: garbage (possibly NaN/Inf) lanes
                    # in the ragged tail must not poison the sums.
                    valid = lane_iota < (limit - off)
                    l = jnp.where(valid, l, 0.0)
                    d = jnp.where(valid, d, 0.0)
                tl = tl + l
                td = td + d
                tdl = tdl + d * l
            sl_ref[...] += tl                            # one RMW per chunk
            sd_ref[...] += td
            sdl_ref[...] += tdl
            return carry

        return body

    if ragged:
        @pl.when(k < num_k - 1)
        def _full():
            jax.lax.fori_loop(0, num_chunks, make_chunk_body(False), 0)

        @pl.when(k == num_k - 1)
        def _tail():
            jax.lax.fori_loop(0, num_chunks, make_chunk_body(True), 0)
    else:
        jax.lax.fori_loop(0, num_chunks, make_chunk_body(False), 0)


def _tversky_small_kernel(pred_ref, label_ref, sl_ref, sd_ref, sdl_ref, *,
                          smoothing, dist_fn):
    """Fallback for degenerate spatial extents (N < 128): one full-width block."""
    p = pred_ref[...].astype(jnp.float32)
    l = label_ref[...].astype(jnp.float32)
    d = _smoothed_distance(p, l, smoothing, dist_fn)
    sl_ref[...] = jnp.sum(l, axis=1, keepdims=True)
    sd_ref[...] = jnp.sum(d, axis=1, keepdims=True)
    sdl_ref[...] = jnp.sum(d * l, axis=1, keepdims=True)


def _vmem_capacity_bytes():
    try:
        info = pltpu.get_tpu_info()
        cap = getattr(info, "vmem_capacity_bytes", None)
        if cap:
            return int(cap)
    except Exception:
        pass
    return 64 * 1024 * 1024          # conservative fallback (v7x: 64 MiB / core)


def _row_tile(bc):
    """Largest multiple of 8 dividing BC and <= 32 (bounds vreg pressure)."""
    if bc % 8 != 0:
        return bc                     # full dim is always a legal block shape
    for cand in (32, 24, 16, 8):
        if bc % cand == 0:
            return cand
    return bc


def tversky_distance_loss(pred, label, mask=None, weights=None, *,
                          alpha=0.5, beta=0.5, epsilon=1e-6, smoothing=0.0,
                          dist_fn="square"):
    """pred: (B, C, X, Y, Z) float; label: (B, C, X, Y, Z) bool.
    Returns the per-channel loss of shape (C-1,), matching the PyTorch module."""
    if pred.shape != label.shape:
        raise ValueError(f"Expected pred shape ({pred.shape}) to equal label "
                         f"shape ({label.shape}).")
    if label.dtype != jnp.bool_:
        raise ValueError(f"Expects boolean label. Got '{label.dtype}'.")
    if dist_fn not in ("abs", "square"):
        raise ValueError(f"Unknown distance function '{dist_fn}'.")
    if smoothing >= 1.0:
        raise ValueError("smoothing must be < 1 (division by 1 - smoothing).")

    B, C = pred.shape[:2]
    N = math.prod(pred.shape[2:])
    BC = B * C

    # Pure-metadata reshapes; no pad / dtype-convert passes through HBM.
    pred2 = pred.reshape(BC, N)
    label2 = label.reshape(BC, N)               # bool straight into the kernel

    bc_tile = _row_tile(BC)
    num_i = BC // bc_tile
    pred_bytes = jnp.dtype(pred.dtype).itemsize

    if N < LANE:
        # Degenerate spatial size: one full-width block per row tile.
        kernel = functools.partial(_tversky_small_kernel,
                                   smoothing=float(smoothing), dist_fn=dist_fn)
        sums = pl.pallas_call(
            kernel,
            out_shape=tuple(jax.ShapeDtypeStruct((BC, 1), jnp.float32)
                            for _ in range(3)),
            grid_spec=pltpu.PrefetchScalarGridSpec(
                num_scalar_prefetch=0,
                grid=(num_i,),
                in_specs=[pl.BlockSpec((bc_tile, N), lambda i: (i, 0)),
                          pl.BlockSpec((bc_tile, N), lambda i: (i, 0))],
                out_specs=[pl.BlockSpec((bc_tile, 1), lambda i: (i, 0))
                           for _ in range(3)]),
            compiler_params=pltpu.CompilerParams(
                dimension_semantics=("parallel",),
                vmem_limit_bytes=32 * 1024 * 1024),
        )(pred2, label2)
    else:
        # ----- inner-chunk and lane-tile sizing -----------------------------
        groups = 8 if bc_tile <= 32 else 4       # 128-lane slices per chunk
        groups = max(1, min(groups, N // LANE))
        chunk = groups * LANE

        vmem_phys = _vmem_capacity_bytes()
        budget = min(int(vmem_phys * 0.45), 56 * 1024 * 1024)
        # Double-buffered input bytes per lane of tile width; the int8-tiled
        # bool label pads sub-32-row blocks in VMEM, hence max(., 32).
        per_lane = 2 * bc_tile * pred_bytes + 2 * max(bc_tile, 32)
        tn_cap = (budget // per_lane) // chunk * chunk
        tn_cap = max(chunk, min(tn_cap, (32768 // chunk) * chunk))
        tn_full = (N // chunk) * chunk           # <= N, multiple of chunk
        tn = min(tn_cap, tn_full)
        num_k = pl.cdiv(N, tn)
        ragged = (N % tn) != 0

        usage = (2 * bc_tile * tn * pred_bytes + 2 * max(bc_tile, 32) * tn
                 + 2 * 3 * bc_tile * LANE * 4)
        vmem_limit = min(int(vmem_phys * 0.9),
                         max(16 * 1024 * 1024, usage + 8 * 1024 * 1024))

        kernel = functools.partial(
            _tversky_stream_kernel,
            smoothing=float(smoothing), dist_fn=dist_fn,
            n_valid=N, tn=tn, groups=groups, ragged=ragged)

        # TODO(synk): if profiling on v7x shows exposed DMA, bump the input
        # BlockSpecs to pipeline_mode=pl.Buffered(3).
        sums = pl.pallas_call(
            kernel,
            out_shape=tuple(jax.ShapeDtypeStruct((BC, num_k * LANE), jnp.float32)
                            for _ in range(3)),
            grid_spec=pltpu.PrefetchScalarGridSpec(
                num_scalar_prefetch=0,
                grid=(num_i, num_k),
                in_specs=[pl.BlockSpec((bc_tile, tn), lambda i, k: (i, k)),
                          pl.BlockSpec((bc_tile, tn), lambda i, k: (i, k))],
                out_specs=[pl.BlockSpec((bc_tile, LANE), lambda i, k: (i, k))
                           for _ in range(3)]),
            compiler_params=pltpu.CompilerParams(
                dimension_semantics=("parallel", "parallel"),
                vmem_limit_bytes=int(vmem_limit)),
        )(pred2, label2)

    sum_l, sum_d, sum_dl = sums
    s_l = sum_l.sum(axis=1)
    s_d = sum_d.sum(axis=1)
    s_dl = sum_dl.sum(axis=1)

    # TP = Σ(1-d)·l ; FP = Σd·(1-l) ; FN = Σd·l   (derived from 3 streamed sums)
    tp = s_l - s_dl
    fp = s_d - s_dl
    fn = s_dl
    tversky = (tp + epsilon) / (tp + alpha * fp + beta * fn + epsilon)
    tversky = tversky.reshape(B, C)
    if mask is not None:
        tversky = mask.astype(jnp.float32) * tversky
    if weights is not None:
        tversky = weights.astype(jnp.float32) * tversky
    # NOTE: like the PyTorch module, the batch mean divides by B even for
    # rows whose mask entry is zero (mask zeroes the term, not the count).
    loss = 1.0 - tversky[:, 1:].mean(axis=0)
    return loss


def _reference_loss(pred, label, mask=None, weights=None, *,
                    alpha=0.5, beta=0.5, epsilon=1e-6, smoothing=0.0,
                    dist_fn="square"):
    """Pure-JAX reference mirroring the PyTorch forward."""
    B, C = pred.shape[:2]
    p = pred.reshape(B, C, -1).astype(jnp.float32)
    l = label.reshape(B, C, -1).astype(jnp.float32)
    sl = jnp.where(l == 0, smoothing, 1.0 - smoothing)
    diff = p - sl
    d = jnp.abs(diff) if dist_fn == "abs" else diff ** 2
    d = d / (1.0 - smoothing)
    TP = ((1.0 - d) * l).sum(axis=2)
    FP = (d * (1.0 - l)).sum(axis=2)
    FN = (d * l).sum(axis=2)
    tv = (TP + epsilon) / (TP + alpha * FP + beta * FN + epsilon)
    if mask is not None:
        tv = mask.astype(jnp.float32) * tv
    if weights is not None:
        tv = weights.astype(jnp.float32) * tv
    return 1.0 - tv[:, 1:].mean(axis=0)


if __name__ == "__main__":
    key = jax.random.PRNGKey(0)
    kp, kl, kw = jax.random.split(key, 3)

    # N = 14*14*14 = 2744 voxels -> two lane tiles, ragged last tile.
    B, C, X, Y, Z = 2, 4, 14, 14, 14
    pred = jax.random.uniform(kp, (B, C, X, Y, Z), dtype=jnp.float32)
    label = jax.random.bernoulli(kl, 0.4, (B, C, X, Y, Z))          # bool
    mask = jnp.ones((B, C), dtype=jnp.float32)
    weights = jax.random.uniform(kw, (B, C), dtype=jnp.float32) + 0.5

    # Config 1: module defaults (square distance, no smoothing) + mask/weights.
    loss = tversky_distance_loss(pred, label, mask, weights,
                                 alpha=0.5, beta=0.5, epsilon=1e-6,
                                 smoothing=0.0, dist_fn="square")
    jax.block_until_ready(loss)
    ref = _reference_loss(pred, label, mask, weights,
                          alpha=0.5, beta=0.5, epsilon=1e-6,
                          smoothing=0.0, dist_fn="square")
    assert loss.shape == (C - 1,)
    assert jnp.allclose(loss, ref, atol=1e-5, rtol=1e-4), (loss, ref)

    # Config 2: label smoothing + abs distance, no mask/weights.
    loss2 = tversky_distance_loss(pred, label, alpha=0.3, beta=0.7,
                                  epsilon=1e-6, smoothing=0.1, dist_fn="abs")
    jax.block_until_ready(loss2)
    ref2 = _reference_loss(pred, label, alpha=0.3, beta=0.7,
                           epsilon=1e-6, smoothing=0.1, dist_fn="abs")
    assert jnp.allclose(loss2, ref2, atol=1e-5, rtol=1e-4), (loss2, ref2)

    print("KERNEL_OK")
</pallas_src>

<mosaic_0001>
module attributes {stable_mosaic.version = 11 : i64} {
  func.func @_tversky_stream_kernel(%arg0: i32, %arg1: i32, %arg2: memref<8x2048xf32, #tpu.memory_space<vmem>>, %arg3: memref<8x2048xi32, #tpu.memory_space<vmem>>, %arg4: memref<8x128xf32, #tpu.memory_space<vmem>>, %arg5: memref<8x128xf32, #tpu.memory_space<vmem>>, %arg6: memref<8x128xf32, #tpu.memory_space<vmem>>) attributes {dimension_semantics = [#tpu.dimension_semantics<parallel>, #tpu.dimension_semantics<parallel>], iteration_bounds = array<i64: 1, 2>, scalar_prefetch = 0 : i64, scratch_operands = 0 : i64, tpu.core_type = #tpu.core_type<tc>, window_params = [{transform_indices = @transform_0, window_bounds = array<i64: 8, 2048>}, {transform_indices = @transform_1, window_bounds = array<i64: 8, 2048>}, {transform_indices = @transform_2, window_bounds = array<i64: 8, 128>}, {transform_indices = @transform_3, window_bounds = array<i64: 8, 128>}, {transform_indices = @transform_4, window_bounds = array<i64: 8, 128>}]} {
    %cst = arith.constant 0.000000e+00 : f32
    %0 = vector.broadcast %cst : f32 to vector<8x128xf32>
    %c0 = arith.constant 0 : index
    %c0_0 = arith.constant 0 : index
    %1 = vector.load %arg4[%c0, %c0_0] : memref<8x128xf32, #tpu.memory_space<vmem>>, vector<8x128xf32>
    tpu.vector_store %arg4[%c0, %c0_0], %0 {strides = array<i32>} : memref<8x128xf32, #tpu.memory_space<vmem>>, vector<8x128xf32>,
    %cst_1 = arith.constant 0.000000e+00 : f32
    %2 = vector.broadcast %cst_1 : f32 to vector<8x128xf32>
    %c0_2 = arith.constant 0 : index
    %c0_3 = arith.constant 0 : index
    %3 = vector.load %arg5[%c0_2, %c0_3] : memref<8x128xf32, #tpu.memory_space<vmem>>, vector<8x128xf32>
    tpu.vector_store %arg5[%c0_2, %c0_3], %2 {strides = array<i32>} : memref<8x128xf32, #tpu.memory_space<vmem>>, vector<8x128xf32>,
    %cst_4 = arith.constant 0.000000e+00 : f32
    %4 = vector.broadcast %cst_4 : f32 to vector<8x128xf32>
    %c0_5 = arith.constant 0 : index
    %c0_6 = arith.constant 0 : index
    %5 = vector.load %arg6[%c0_5, %c0_6] : memref<8x128xf32, #tpu.memory_space<vmem>>, vector<8x128xf32>
    tpu.vector_store %arg6[%c0_5, %c0_6], %4 {strides = array<i32>} : memref<8x128xf32, #tpu.memory_space<vmem>>, vector<8x128xf32>,
    %c1_i32 = arith.constant 1 : i32
    %6 = arith.cmpi slt, %arg1, %c1_i32 : i32
    %7 = arith.extui %6 : i1 to i32
    %c0_i32 = arith.constant 0 : i32
    %8 = arith.cmpi ne, %7, %c0_i32 : i32
    scf.if %8 {
      %c0_i32_9 = arith.constant 0 : i32
      %c2_i32 = arith.constant 2 : i32
      %12 = arith.addi %c0_i32_9, %c2_i32 : i32
      %c1_i32_10 = arith.constant 1 : i32
      scf.for %arg7 = %c0_i32_9 to %12 step %c1_i32_10  : i32 {
        %cst_12 = arith.constant 0.000000e+00 : f32
        %13 = vector.broadcast %cst_12 : f32 to vector<8x128xf32>
        %cst_13 = arith.constant 0.000000e+00 : f32
        %14 = vector.broadcast %cst_13 : f32 to vector<8x128xf32>
        %cst_14 = arith.constant 0.000000e+00 : f32
        %15 = vector.broadcast %cst_14 : f32 to vector<8x128xf32>
        %c1024_i32 = arith.constant 1024 : i32
        %16 = arith.muli %arg7, %c1024_i32 : i32
        %c0_i32_15 = arith.constant 0 : i32
        %17 = arith.addi %16, %c0_i32_15 : i32
        %18 = tpu.assume_multiple %17, 128 : i32
        %c0_16 = arith.constant 0 : index
        %19 = arith.index_cast %18 : i32 to index
        %20 = vector.load %arg2[%c0_16, %19] : memref<8x2048xf32, #tpu.memory_space<vmem>>, vector<8x128xf32>
        %c0_17 = arith.constant 0 : index
        %21 = arith.index_cast %18 : i32 to index
        %22 = vector.load %arg3[%c0_17, %21] : memref<8x2048xi32, #tpu.memory_space<vmem>>, vector<8x128xi32>
        %cst_18 = arith.constant dense<0> : vector<8x128xi32>
        %23 = arith.cmpi ne, %22, %cst_18 : vector<8x128xi32>
        %24 = arith.extui %23 : vector<8x128xi1> to vector<8x128xi32>
        %25 = arith.sitofp %24 : vector<8x128xi32> to vector<8x128xf32>
        %26 = arith.subf %20, %25 : vector<8x128xf32>
        %27 = arith.mulf %26, %26 : vector<8x128xf32>
        %28 = arith.addf %13, %25 : vector<8x128xf32>
        %29 = arith.addf %14, %27 : vector<8x128xf32>
        %30 = arith.mulf %27, %25 : vector<8x128xf32>
        %31 = arith.addf %15, %30 : vector<8x128xf32>
        %c1024_i32_19 = arith.constant 1024 : i32
        %32 = arith.muli %arg7, %c1024_i32_19 : i32
        %c128_i32 = arith.constant 128 : i32
        %33 = arith.addi %32, %c128_i32 : i32
        %34 = tpu.assume_multiple %33, 128 : i32
        %c0_20 = arith.constant 0 : index
        %35 = arith.index_cast %34 : i32 to index
        %36 = vector.load %arg2[%c0_20, %35] : memref<8x2048xf32, #tpu.memory_space<vmem>>, vector<8x128xf32>
        %c0_21 = arith.constant 0 : index
        %37 = arith.index_cast %34 : i32 to index
        %38 = vector.load %arg3[%c0_21, %37] : memref<8x2048xi32, #tpu.memory_space<vmem>>, vector<8x128xi32>
        %cst_22 = arith.constant dense<0> : vector<8x128xi32>
        %39 = arith.cmpi ne, %38, %cst_22 : vector<8x128xi32>
        %40 = arith.extui %39 : vector<8x128xi1> to vector<8x128xi32>
        %41 = arith.sitofp %40 : vector<8x128xi32> to vector<8x128xf32>
        %42 = arith.subf %36, %41 : vector<8x128xf32>
        %43 = arith.mulf %42, %42 : vector<8x128xf32>
        %44 = arith.addf %28, %41 : vector<8x128xf32>
        %45 = arith.addf %29, %43 : vector<8x128xf32>
        %46 = arith.mulf %43, %41 : vector<8x128xf32>
        %47 = arith.addf %31, %46 : vector<8x128xf32>
        %c1024_i32_23 = arith.constant 1024 : i32
        %48 = arith.muli %arg7, %c1024_i32_23 : i32
        %c256_i32 = arith.constant 256 : i32
        %49 = arith.addi %48, %c256_i32 : i32
        %50 = tpu.assume_multiple %49, 128 : i32
        %c0_24 = arith.constant 0 : index
        %51 = arith.index_cast %50 : i32 to index
        %52 = vector.load %arg2[%c0_24, %51] : memref<8x2048xf32, #tpu.memory_space<vmem>>, vector<8x128xf32>
        %c0_25 = arith.constant 0 : index
        %53 = arith.index_cast %50 : i32 to index
        %54 = vector.load %arg3[%c0_25, %53] : memref<8x2048xi32, #tpu.memory_space<vmem>>, vector<8x128xi32>
        %cst_26 = arith.constant dense<0> : vector<8x128xi32>
        %55 = arith.cmpi ne, %54, %cst_26 : vector<8x128xi32>
        %56 = arith.extui %55 : vector<8x128xi1> to vector<8x128xi32>
        %57 = arith.sitofp %56 : vector<8x128xi32> to vector<8x128xf32>
        %58 = arith.subf %52, %57 : vector<8x128xf32>
        %59 = arith.mulf %58, %58 : vector<8x128xf32>
        %60 = arith.addf %44, %57 : vector<8x128xf32>
        %61 = arith.addf %45, %59 : vector<8x128xf32>
        %62 = arith.mulf %59, %57 : vector<8x128xf32>
        %63 = arith.addf %47, %62 : vector<8x128xf32>
        %c1024_i32_27 = arith.constant 1024 : i32
        %64 = arith.muli %arg7, %c1024_i32_27 : i32
        %c384_i32 = arith.constant 384 : i32
        %65 = arith.addi %64, %c384_i32 : i32
        %66 = tpu.assume_multiple %65, 128 : i32
        %c0_28 = arith.constant 0 : index
        %67 = arith.index_cast %66 : i32 to index
        %68 = vector.load %arg2[%c0_28, %67] : memref<8x2048xf32, #tpu.memory_space<vmem>>, vector<8x128xf32>
        %c0_29 = arith.constant 0 : index
        %69 = arith.index_cast %66 : i32 to index
        %70 = vector.load %arg3[%c0_29, %69] : memref<8x2048xi32, #tpu.memory_space<vmem>>, vector<8x128xi32>
        %cst_30 = arith.constant dense<0> : vector<8x128xi32>
        %71 = arith.cmpi ne, %70, %cst_30 : vector<8x128xi32>
        %72 = arith.extui %71 : vector<8x128xi1> to vector<8x128xi32>
        %73 = arith.sitofp %72 : vector<8x128xi32> to vector<8x128xf32>
        %74 = arith.subf %68, %73 : vector<8x128xf32>
        %75 = arith.mulf %74, %74 : vector<8x128xf32>
        %76 = arith.addf %60, %73 : vector<8x128xf32>
        %77 = arith.addf %61, %75 : vector<8x128xf32>
        %78 = arith.mulf %75, %73 : vector<8x128xf32>
        %79 = arith.addf %63, %78 : vector<8x128xf32>
        %c1024_i32_31 = arith.constant 1024 : i32
        %80 = arith.muli %arg7, %c1024_i32_31 : i32
        %c512_i32 = arith.constant 512 : i32
        %81 = arith.addi %80, %c512_i32 : i32
        %82 = tpu.assume_multiple %81, 128 : i32
        %c0_32 = arith.constant 0 : index
        %83 = arith.index_cast %82 : i32 to index
        %84 = vector.load %arg2[%c0_32, %83] : memref<8x2048xf32, #tpu.memory_space<vmem>>, vector<8x128xf32>
        %c0_33 = arith.constant 0 : index
        %85 = arith.index_cast %82 : i32 to index
        %86 = vector.load %arg3[%c0_33, %85] : memref<8x2048xi32, #tpu.memory_space<vmem>>, vector<8x128xi32>
        %cst_34 = arith.constant dense<0> : vector<8x128xi32>
        %87 = arith.cmpi ne, %86, %cst_34 : vector<8x128xi32>
        %88 = arith.extui %87 : vector<8x128xi1> to vector<8x128xi32>
        %89 = arith.sitofp %88 : vector<8x128xi32> to vector<8x128xf32>
        %90 = arith.subf %84, %89 : vector<8x128xf32>
        %91 = arith.mulf %90, %90 : vector<8x128xf32>
        %92 = arith.addf %76, %89 : vector<8x128xf32>
        %93 = arith.addf %77, %91 : vector<8x128xf32>
        %94 = arith.mulf %91, %89 : vector<8x128xf32>
        %95 = arith.addf %79, %94 : vector<8x128xf32>
        %c1024_i32_35 = arith.constant 1024 : i32
        %96 = arith.muli %arg7, %c1024_i32_35 : i32
        %c640_i32 = arith.constant 640 : i32
        %97 = arith.addi %96, %c640_i32 : i32
        %98 = tpu.assume_multiple %97, 128 : i32
        %c0_36 = arith.constant 0 : index
        %99 = arith.index_cast %98 : i32 to index
        %100 = vector.load %arg2[%c0_36, %99] : memref<8x2048xf32, #tpu.memory_space<vmem>>, vector<8x128xf32>
        %c0_37 = arith.constant 0 : index
        %101 = arith.index_cast %98 : i32 to index
        %102 = vector.load %arg3[%c0_37, %101] : memref<8x2048xi32, #tpu.memory_space<vmem>>, vector<8x128xi32>
        %cst_38 = arith.constant dense<0> : vector<8x128xi32>
        %103 = arith.cmpi ne, %102, %cst_38 : vector<8x128xi32>
        %104 = arith.extui %103 : vector<8x128xi1> to vector<8x128xi32>
        %105 = arith.sitofp %104 : vector<8x128xi32> to vector<8x128xf32>
        %106 = arith.subf %100, %105 : vector<8x128xf32>
        %107 = arith.mulf %106, %106 : vector<8x128xf32>
        %108 = arith.addf %92, %105 : vector<8x128xf32>
        %109 = arith.addf %93, %107 : vector<8x128xf32>
        %110 = arith.mulf %107, %105 : vector<8x128xf32>
        %111 = arith.addf %95, %110 : vector<8x128xf32>
        %c1024_i32_39 = arith.constant 1024 : i32
        %112 = arith.muli %arg7, %c1024_i32_39 : i32
        %c768_i32 = arith.constant 768 : i32
        %113 = arith.addi %112, %c768_i32 : i32
        %114 = tpu.assume_multiple %113, 128 : i32
        %c0_40 = arith.constant 0 : index
        %115 = arith.index_cast %114 : i32 to index
        %116 = vector.load %arg2[%c0_40, %115] : memref<8x2048xf32, #tpu.memory_space<vmem>>, vector<8x128xf32>
        %c0_41 = arith.constant 0 : index
        %117 = arith.index_cast %114 : i32 to index
        %118 = vector.load %arg3[%c0_41, %117] : memref<8x2048xi32, #tpu.memory_space<vmem>>, vector<8x128xi32>
        %cst_42 = arith.constant dense<0> : vector<8x128xi32>
        %119 = arith.cmpi ne, %118, %cst_42 : vector<8x128xi32>
        %120 = arith.extui %119 : vector<8x128xi1> to vector<8x128xi32>
        %121 = arith.sitofp %120 : vector<8x128xi32> to vector<8x128xf32>
        %122 = arith.subf %116, %121 : vector<8x128xf32>
        %123 = arith.mulf %122, %122 : vector<8x128xf32>
        %124 = arith.addf %108, %121 : vector<8x128xf32>
        %125 = arith.addf %109, %123 : vector<8x128xf32>
        %126 = arith.mulf %123, %121 : vector<8x128xf32>
        %127 = arith.addf %111, %126 : vector<8x128xf32>
        %c1024_i32_43 = arith.constant 1024 : i32
        %128 = arith.muli %arg7, %c1024_i32_43 : i32
        %c896_i32 = arith.constant 896 : i32
        %129 = arith.addi %128, %c896_i32 : i32
        %130 = tpu.assume_multiple %129, 128 : i32
        %c0_44 = arith.constant 0 : index
        %131 = arith.index_cast %130 : i32 to index
        %132 = vector.load %arg2[%c0_44, %131] : memref<8x2048xf32, #tpu.memory_space<vmem>>, vector<8x128xf32>
        %c0_45 = arith.constant 0 : index
        %133 = arith.index_cast %130 : i32 to index
        %134 = vector.load %arg3[%c0_45, %133] : memref<8x2048xi32, #tpu.memory_space<vmem>>, vector<8x128xi32>
        %cst_46 = arith.constant dense<0> : vector<8x128xi32>
        %135 = arith.cmpi ne, %134, %cst_46 : vector<8x128xi32>
        %136 = arith.extui %135 : vector<8x128xi1> to vector<8x128xi32>
        %137 = arith.sitofp %136 : vector<8x128xi32> to vector<8x128xf32>
        %138 = arith.subf %132, %137 : vector<8x128xf32>
        %139 = arith.mulf %138, %138 : vector<8x128xf32>
        %140 = arith.addf %124, %137 : vector<8x128xf32>
        %141 = arith.addf %125, %139 : vector<8x128xf32>
        %142 = arith.mulf %139, %137 : vector<8x128xf32>
        %143 = arith.addf %127, %142 : vector<8x128xf32>
        %c0_47 = arith.constant 0 : index
        %c0_48 = arith.constant 0 : index
        %144 = vector.load %arg4[%c0_47, %c0_48] : memref<8x128xf32, #tpu.memory_space<vmem>>, vector<8x128xf32>
        %145 = arith.addf %144, %140 : vector<8x128xf32>
        %c0_49 = arith.constant 0 : index
        %c0_50 = arith.constant 0 : index
        %146 = vector.load %arg4[%c0_49, %c0_50] : memref<8x128xf32, #tpu.memory_space<vmem>>, vector<8x128xf32>
        tpu.vector_store %arg4[%c0_49, %c0_50], %145 {strides = array<i32>} : memref<8x128xf32, #tpu.memory_space<vmem>>, vector<8x128xf32>,
        %c0_51 = arith.constant 0 : index
        %c0_52 = arith.constant 0 : index
        %147 = vector.load %arg5[%c0_51, %c0_52] : memref<8x128xf32, #tpu.memory_space<vmem>>, vector<8x128xf32>
        %148 = arith.addf %147, %141 : vector<8x128xf32>
        %c0_53 = arith.constant 0 : index
        %c0_54 = arith.constant 0 : index
        %149 = vector.load %arg5[%c0_53, %c0_54] : memref<8x128xf32, #tpu.memory_space<vmem>>, vector<8x128xf32>
        tpu.vector_store %arg5[%c0_53, %c0_54], %148 {strides = array<i32>} : memref<8x128xf32, #tpu.memory_space<vmem>>, vector<8x128xf32>,
        %c0_55 = arith.constant 0 : index
        %c0_56 = arith.constant 0 : index
        %150 = vector.load %arg6[%c0_55, %c0_56] : memref<8x128xf32, #tpu.memory_space<vmem>>, vector<8x128xf32>
        %151 = arith.addf %150, %143 : vector<8x128xf32>
        %c0_57 = arith.constant 0 : index
        %c0_58 = arith.constant 0 : index
        %152 = vector.load %arg6[%c0_57, %c0_58] : memref<8x128xf32, #tpu.memory_space<vmem>>, vector<8x128xf32>
        tpu.vector_store %arg6[%c0_57, %c0_58], %151 {strides = array<i32>} : memref<8x128xf32, #tpu.memory_space<vmem>>, vector<8x128xf32>,
      }
      %c2_i32_11 = arith.constant 2 : i32
    } else {
    }
    %c1_i32_7 = arith.constant 1 : i32
    %9 = arith.cmpi eq, %arg1, %c1_i32_7 : i32
    %10 = arith.extui %9 : i1 to i32
    %c0_i32_8 = arith.constant 0 : i32
    %11 = arith.cmpi ne, %10, %c0_i32_8 : i32
    scf.if %11 {
      %12 = tpu.iota {dimensions = array<i32: 1>} : vector<8x128xi32>
      %c2048_i32 = arith.constant 2048 : i32
      %13 = arith.muli %arg1, %c2048_i32 : i32
      %c2744_i32 = arith.constant 2744 : i32
      %14 = arith.subi %c2744_i32, %13 : i32
      %c0_i32_9 = arith.constant 0 : i32
      %c2_i32 = arith.constant 2 : i32
      %15 = arith.addi %c0_i32_9, %c2_i32 : i32
      %c1_i32_10 = arith.constant 1 : i32
      scf.for %arg7 = %c0_i32_9 to %15 step %c1_i32_10  : i32 {
        %cst_12 = arith.constant 0.000000e+00 : f32
        %16 = vector.broadcast %cst_12 : f32 to vector<8x128xf32>
        %cst_13 = arith.constant 0.000000e+00 : f32
        %17 = vector.broadcast %cst_13 : f32 to vector<8x128xf32>
        %cst_14 = arith.constant 0.000000e+00 : f32
        %18 = vector.broadcast %cst_14 : f32 to vector<8x128xf32>
        %c1024_i32 = arith.constant 1024 : i32
        %19 = arith.muli %arg7, %c1024_i32 : i32
        %c0_i32_15 = arith.constant 0 : i32
        %20 = arith.addi %19, %c0_i32_15 : i32
        %21 = tpu.assume_multiple %20, 128 : i32
        %c0_16 = arith.constant 0 : index
        %22 = arith.index_cast %21 : i32 to index
        %23 = vector.load %arg2[%c0_16, %22] : memref<8x2048xf32, #tpu.memory_space<vmem>>, vector<8x128xf32>
        %c0_17 = arith.constant 0 : index
        %24 = arith.index_cast %21 : i32 to index
        %25 = vector.load %arg3[%c0_17, %24] : memref<8x2048xi32, #tpu.memory_space<vmem>>, vector<8x128xi32>
        %cst_18 = arith.constant dense<0> : vector<8x128xi32>
        %26 = arith.cmpi ne, %25, %cst_18 : vector<8x128xi32>
        %27 = arith.extui %26 : vector<8x128xi1> to vector<8x128xi32>
        %28 = arith.sitofp %27 : vector<8x128xi32> to vector<8x128xf32>
        %29 = arith.subf %23, %28 : vector<8x128xf32>
        %30 = arith.mulf %29, %29 : vector<8x128xf32>
        %31 = arith.subi %14, %21 : i32
        %32 = vector.broadcast %31 : i32 to vector<8x128xi32>
        %33 = arith.cmpi slt, %12, %32 : vector<8x128xi32>
        %cst_19 = arith.constant 0.000000e+00 : f32
        %34 = vector.broadcast %cst_19 : f32 to vector<8x128xf32>
        %35 = arith.select %33, %28, %34 : vector<8x128xi1>, vector<8x128xf32>
        %cst_20 = arith.constant 0.000000e+00 : f32
        %36 = vector.broadcast %cst_20 : f32 to vector<8x128xf32>
        %37 = arith.select %33, %30, %36 : vector<8x128xi1>, vector<8x128xf32>
        %38 = arith.addf %16, %35 : vector<8x128xf32>
        %39 = arith.addf %17, %37 : vector<8x128xf32>
        %40 = arith.mulf %37, %35 : vector<8x128xf32>
        %41 = arith.addf %18, %40 : vector<8x128xf32>
        %c1024_i32_21 = arith.constant 1024 : i32
        %42 = arith.muli %arg7, %c1024_i32_21 : i32
        %c128_i32 = arith.constant 128 : i32
        %43 = arith.addi %42, %c128_i32 : i32
        %44 = tpu.assume_multiple %43, 128 : i32
        %c0_22 = arith.constant 0 : index
        %45 = arith.index_cast %44 : i32 to index
        %46 = vector.load %arg2[%c0_22, %45] : memref<8x2048xf32, #tpu.memory_space<vmem>>, vector<8x128xf32>
        %c0_23 = arith.constant 0 : index
        %47 = arith.index_cast %44 : i32 to index
        %48 = vector.load %arg3[%c0_23, %47] : memref<8x2048xi32, #tpu.memory_space<vmem>>, vector<8x128xi32>
        %cst_24 = arith.constant dense<0> : vector<8x128xi32>
        %49 = arith.cmpi ne, %48, %cst_24 : vector<8x128xi32>
        %50 = arith.extui %49 : vector<8x128xi1> to vector<8x128xi32>
        %51 = arith.sitofp %50 : vector<8x128xi32> to vector<8x128xf32>
        %52 = arith.subf %46, %51 : vector<8x128xf32>
        %53 = arith.mulf %52, %52 : vector<8x128xf32>
        %54 = arith.subi %14, %44 : i32
        %55 = vector.broadcast %54 : i32 to vector<8x128xi32>
        %56 = arith.cmpi slt, %12, %55 : vector<8x128xi32>
        %cst_25 = arith.constant 0.000000e+00 : f32
        %57 = vector.broadcast %cst_25 : f32 to vector<8x128xf32>
        %58 = arith.select %56, %51, %57 : vector<8x128xi1>, vector<8x128xf32>
        %cst_26 = arith.constant 0.000000e+00 : f32
        %59 = vector.broadcast %cst_26 : f32 to vector<8x128xf32>
        %60 = arith.select %56, %53, %59 : vector<8x128xi1>, vector<8x128xf32>
        %61 = arith.addf %38, %58 : vector<8x128xf32>
        %62 = arith.addf %39, %60 : vector<8x128xf32>
        %63 = arith.mulf %60, %58 : vector<8x128xf32>
        %64 = arith.addf %41, %63 : vector<8x128xf32>
        %c1024_i32_27 = arith.constant 1024 : i32
        %65 = arith.muli %arg7, %c1024_i32_27 : i32
        %c256_i32 = arith.constant 256 : i32
        %66 = arith.addi %65, %c256_i32 : i32
        %67 = tpu.assume_multiple %66, 128 : i32
        %c0_28 = arith.constant 0 : index
        %68 = arith.index_cast %67 : i32 to index
        %69 = vector.load %arg2[%c0_28, %68] : memref<8x2048xf32, #tpu.memory_space<vmem>>, vector<8x128xf32>
        %c0_29 = arith.constant 0 : index
        %70 = arith.index_cast %67 : i32 to index
        %71 = vector.load %arg3[%c0_29, %70] : memref<8x2048xi32, #tpu.memory_space<vmem>>, vector<8x128xi32>
        %cst_30 = arith.constant dense<0> : vector<8x128xi32>
        %72 = arith.cmpi ne, %71, %cst_30 : vector<8x128xi32>
        %73 = arith.extui %72 : vector<8x128xi1> to vector<8x128xi32>
        %74 = arith.sitofp %73 : vector<8x128xi32> to vector<8x128xf32>
        %75 = arith.subf %69, %74 : vector<8x128xf32>
        %76 = arith.mulf %75, %75 : vector<8x128xf32>
        %77 = arith.subi %14, %67 : i32
        %78 = vector.broadcast %77 : i32 to vector<8x128xi32>
        %79 = arith.cmpi slt, %12, %78 : vector<8x128xi32>
        %cst_31 = arith.constant 0.000000e+00 : f32
        %80 = vector.broadcast %cst_31 : f32 to vector<8x128xf32>
        %81 = arith.select %79, %74, %80 : vector<8x128xi1>, vector<8x128xf32>
        %cst_32 = arith.constant 0.000000e+00 : f32
        %82 = vector.broadcast %cst_32 : f32 to vector<8x128xf32>
        %83 = arith.select %79, %76, %82 : vector<8x128xi1>, vector<8x128xf32>
        %84 = arith.addf %61, %81 : vector<8x128xf32>
        %85 = arith.addf %62, %83 : vector<8x128xf32>
        %86 = arith.mulf %83, %81 : vector<8x128xf32>
        %87 = arith.addf %64, %86 : vector<8x128xf32>
        %c1024_i32_33 = arith.constant 1024 : i32
        %88 = arith.muli %arg7, %c1024_i32_33 : i32
        %c384_i32 = arith.constant 384 : i32
        %89 = arith.addi %88, %c384_i32 : i32
        %90 = tpu.assume_multiple %89, 128 : i32
        %c0_34 = arith.constant 0 : index
        %91 = arith.index_cast %90 : i32 to index
        %92 = vector.load %arg2[%c0_34, %91] : memref<8x2048xf32, #tpu.memory_space<vmem>>, vector<8x128xf32>
        %c0_35 = arith.constant 0 : index
        %93 = arith.index_cast %90 : i32 to index
        %94 = vector.load %arg3[%c0_35, %93] : memref<8x2048xi32, #tpu.memory_space<vmem>>, vector<8x128xi32>
        %cst_36 = arith.constant dense<0> : vector<8x128xi32>
        %95 = arith.cmpi ne, %94, %cst_36 : vector<8x128xi32>
        %96 = arith.extui %95 : vector<8x128xi1> to vector<8x128xi32>
        %97 = arith.sitofp %96 : vector<8x128xi32> to vector<8x128xf32>
        %98 = arith.subf %92, %97 : vector<8x128xf32>
        %99 = arith.mulf %98, %98 : vector<8x128xf32>
        %100 = arith.subi %14, %90 : i32
        %101 = vector.broadcast %100 : i32 to vector<8x128xi32>
        %102 = arith.cmpi slt, %12, %101 : vector<8x128xi32>
        %cst_37 = arith.constant 0.000000e+00 : f32
        %103 = vector.broadcast %cst_37 : f32 to vector<8x128xf32>
        %104 = arith.select %102, %97, %103 : vector<8x128xi1>, vector<8x128xf32>
        %cst_38 = arith.constant 0.000000e+00 : f32
        %105 = vector.broadcast %cst_38 : f32 to vector<8x128xf32>
        %106 = arith.select %102, %99, %105 : vector<8x128xi1>, vector<8x128xf32>
        %107 = arith.addf %84, %104 : vector<8x128xf32>
        %108 = arith.addf %85, %106 : vector<8x128xf32>
        %109 = arith.mulf %106, %104 : vector<8x128xf32>
        %110 = arith.addf %87, %109 : vector<8x128xf32>
        %c1024_i32_39 = arith.constant 1024 : i32
        %111 = arith.muli %arg7, %c1024_i32_39 : i32
        %c512_i32 = arith.constant 512 : i32
        %112 = arith.addi %111, %c512_i32 : i32
        %113 = tpu.assume_multiple %112, 128 : i32
        %c0_40 = arith.constant 0 : index
        %114 = arith.index_cast %113 : i32 to index
        %115 = vector.load %arg2[%c0_40, %114] : memref<8x2048xf32, #tpu.memory_space<vmem>>, vector<8x128xf32>
        %c0_41 = arith.constant 0 : index
        %116 = arith.index_cast %113 : i32 to index
        %117 = vector.load %arg3[%c0_41, %116] : memref<8x2048xi32, #tpu.memory_space<vmem>>, vector<8x128xi32>
        %cst_42 = arith.constant dense<0> : vector<8x128xi32>
        %118 = arith.cmpi ne, %117, %cst_42 : vector<8x128xi32>
        %119 = arith.extui %118 : vector<8x128xi1> to vector<8x128xi32>
        %120 = arith.sitofp %119 : vector<8x128xi32> to vector<8x128xf32>
        %121 = arith.subf %115, %120 : vector<8x128xf32>
        %122 = arith.mulf %121, %121 : vector<8x128xf32>
        %123 = arith.subi %14, %113 : i32
        %124 = vector.broadcast %123 : i32 to vector<8x128xi32>
        %125 = arith.cmpi slt, %12, %124 : vector<8x128xi32>
        %cst_43 = arith.constant 0.000000e+00 : f32
        %126 = vector.broadcast %cst_43 : f32 to vector<8x128xf32>
        %127 = arith.select %125, %120, %126 : vector<8x128xi1>, vector<8x128xf32>
        %cst_44 = arith.constant 0.000000e+00 : f32
        %128 = vector.broadcast %cst_44 : f32 to vector<8x128xf32>
        %129 = arith.select %125, %122, %128 : vector<8x128xi1>, vector<8x128xf32>
        %130 = arith.addf %107, %127 : vector<8x128xf32>
        %131 = arith.addf %108, %129 : vector<8x128xf32>
        %132 = arith.mulf %129, %127 : vector<8x128xf32>
        %133 = arith.addf %110, %132 : vector<8x128xf32>
        %c1024_i32_45 = arith.constant 1024 : i32
        %134 = arith.muli %arg7, %c1024_i32_45 : i32
        %c640_i32 = arith.constant 640 : i32
        %135 = arith.addi %134, %c640_i32 : i32
        %136 = tpu.assume_multiple %135, 128 : i32
        %c0_46 = arith.constant 0 : index
        %137 = arith.index_cast %136 : i32 to index
        %138 = vector.load %arg2[%c0_46, %137] : memref<8x2048xf32, #tpu.memory_space<vmem>>, vector<8x128xf32>
        %c0_47 = arith.constant 0 : index
        %139 = arith.index_cast %136 : i32 to index
        %140 = vector.load %arg3[%c0_47, %139] : memref<8x2048xi32, #tpu.memory_space<vmem>>, vector<8x128xi32>
        %cst_48 = arith.constant dense<0> : vector<8x128xi32>
        %141 = arith.cmpi ne, %140, %cst_48 : vector<8x128xi32>
        %142 = arith.extui %141 : vector<8x128xi1> to vector<8x128xi32>
        %143 = arith.sitofp %142 : vector<8x128xi32> to vector<8x128xf32>
        %144 = arith.subf %138, %143 : vector<8x128xf32>
        %145 = arith.mulf %144, %144 : vector<8x128xf32>
        %146 = arith.subi %14, %136 : i32
        %147 = vector.broadcast %146 : i32 to vector<8x128xi32>
        %148 = arith.cmpi slt, %12, %147 : vector<8x128xi32>
        %cst_49 = arith.constant 0.000000e+00 : f32
        %149 = vector.broadcast %cst_49 : f32 to vector<8x128xf32>
        %150 = arith.select %148, %143, %149 : vector<8x128xi1>, vector<8x128xf32>
        %cst_50 = arith.constant 0.000000e+00 : f32
        %151 = vector.broadcast %cst_50 : f32 to vector<8x128xf32>
        %152 = arith.select %148, %145, %151 : vector<8x128xi1>, vector<8x128xf32>
        %153 = arith.addf %130, %150 : vector<8x128xf32>
        %154 = arith.addf %131, %152 : vector<8x128xf32>
        %155 = arith.mulf %152, %150 : vector<8x128xf32>
        %156 = arith.addf %133, %155 : vector<8x128xf32>
        %c1024_i32_51 = arith.constant 1024 : i32
        %157 = arith.muli %arg7, %c1024_i32_51 : i32
        %c768_i32 = arith.constant 768 : i32
        %158 = arith.addi %157, %c768_i32 : i32
        %159 = tpu.assume_multiple %158, 128 : i32
        %c0_52 = arith.constant 0 : index
        %160 = arith.index_cast %159 : i32 to index
        %161 = vector.load %arg2[%c0_52, %160] : memref<8x2048xf32, #tpu.memory_space<vmem>>, vector<8x128xf32>
        %c0_53 = arith.constant 0 : index
        %162 = arith.index_cast %159 : i32 to index
        %163 = vector.load %arg3[%c0_53, %162] : memref<8x2048xi32, #tpu.memory_space<vmem>>, vector<8x128xi32>
        %cst_54 = arith.constant dense<0> : vector<8x128xi32>
        %164 = arith.cmpi ne, %163, %cst_54 : vector<8x128xi32>
        %165 = arith.extui %164 : vector<8x128xi1> to vector<8x128xi32>
        %166 = arith.sitofp %165 : vector<8x128xi32> to vector<8x128xf32>
        %167 = arith.subf %161, %166 : vector<8x128xf32>
        %168 = arith.mulf %167, %167 : vector<8x128xf32>
        %169 = arith.subi %14, %159 : i32
        %170 = vector.broadcast %169 : i32 to vector<8x128xi32>
        %171 = arith.cmpi slt, %12, %170 : vector<8x128xi32>
        %cst_55 = arith.constant 0.000000e+00 : f32
        %172 = vector.broadcast %cst_55 : f32 to vector<8x128xf32>
        %173 = arith.select %171, %166, %172 : vector<8x128xi1>, vector<8x128xf32>
        %cst_56 = arith.constant 0.000000e+00 : f32
        %174 = vector.broadcast %cst_56 : f32 to vector<8x128xf32>
        %175 = arith.select %171, %168, %174 : vector<8x128xi1>, vector<8x128xf32>
        %176 = arith.addf %153, %173 : vector<8x128xf32>
        %177 = arith.addf %154, %175 : vector<8x128xf32>
        %178 = arith.mulf %175, %173 : vector<8x128xf32>
        %179 = arith.addf %156, %178 : vector<8x128xf32>
        %c1024_i32_57 = arith.constant 1024 : i32
        %180 = arith.muli %arg7, %c1024_i32_57 : i32
        %c896_i32 = arith.constant 896 : i32
        %181 = arith.addi %180, %c896_i32 : i32
        %182 = tpu.assume_multiple %181, 128 : i32
        %c0_58 = arith.constant 0 : index
        %183 = arith.index_cast %182 : i32 to index
        %184 = vector.load %arg2[%c0_58, %183] : memref<8x2048xf32, #tpu.memory_space<vmem>>, vector<8x128xf32>
        %c0_59 = arith.constant 0 : index
        %185 = arith.index_cast %182 : i32 to index
        %186 = vector.load %arg3[%c0_59, %185] : memref<8x2048xi32, #tpu.memory_space<vmem>>, vector<8x128xi32>
        %cst_60 = arith.constant dense<0> : vector<8x128xi32>
        %187 = arith.cmpi ne, %186, %cst_60 : vector<8x128xi32>
        %188 = arith.extui %187 : vector<8x128xi1> to vector<8x128xi32>
        %189 = arith.sitofp %188 : vector<8x128xi32> to vector<8x128xf32>
        %190 = arith.subf %184, %189 : vector<8x128xf32>
        %191 = arith.mulf %190, %190 : vector<8x128xf32>
        %192 = arith.subi %14, %182 : i32
        %193 = vector.broadcast %192 : i32 to vector<8x128xi32>
        %194 = arith.cmpi slt, %12, %193 : vector<8x128xi32>
        %cst_61 = arith.constant 0.000000e+00 : f32
        %195 = vector.broadcast %cst_61 : f32 to vector<8x128xf32>
        %196 = arith.select %194, %189, %195 : vector<8x128xi1>, vector<8x128xf32>
        %cst_62 = arith.constant 0.000000e+00 : f32
        %197 = vector.broadcast %cst_62 : f32 to vector<8x128xf32>
        %198 = arith.select %194, %191, %197 : vector<8x128xi1>, vector<8x128xf32>
        %199 = arith.addf %176, %196 : vector<8x128xf32>
        %200 = arith.addf %177, %198 : vector<8x128xf32>
        %201 = arith.mulf %198, %196 : vector<8x128xf32>
        %202 = arith.addf %179, %201 : vector<8x128xf32>
        %c0_63 = arith.constant 0 : index
        %c0_64 = arith.constant 0 : index
        %203 = vector.load %arg4[%c0_63, %c0_64] : memref<8x128xf32, #tpu.memory_space<vmem>>, vector<8x128xf32>
        %204 = arith.addf %203, %199 : vector<8x128xf32>
        %c0_65 = arith.constant 0 : index
        %c0_66 = arith.constant 0 : index
        %205 = vector.load %arg4[%c0_65, %c0_66] : memref<8x128xf32, #tpu.memory_space<vmem>>, vector<8x128xf32>
        tpu.vector_store %arg4[%c0_65, %c0_66], %204 {strides = array<i32>} : memref<8x128xf32, #tpu.memory_space<vmem>>, vector<8x128xf32>,
        %c0_67 = arith.constant 0 : index
        %c0_68 = arith.constant 0 : index
        %206 = vector.load %arg5[%c0_67, %c0_68] : memref<8x128xf32, #tpu.memory_space<vmem>>, vector<8x128xf32>
        %207 = arith.addf %206, %200 : vector<8x128xf32>
        %c0_69 = arith.constant 0 : index
        %c0_70 = arith.constant 0 : index
        %208 = vector.load %arg5[%c0_69, %c0_70] : memref<8x128xf32, #tpu.memory_space<vmem>>, vector<8x128xf32>
        tpu.vector_store %arg5[%c0_69, %c0_70], %207 {strides = array<i32>} : memref<8x128xf32, #tpu.memory_space<vmem>>, vector<8x128xf32>,
        %c0_71 = arith.constant 0 : index
        %c0_72 = arith.constant 0 : index
        %209 = vector.load %arg6[%c0_71, %c0_72] : memref<8x128xf32, #tpu.memory_space<vmem>>, vector<8x128xf32>
        %210 = arith.addf %209, %202 : vector<8x128xf32>
        %c0_73 = arith.constant 0 : index
        %c0_74 = arith.constant 0 : index
        %211 = vector.load %arg6[%c0_73, %c0_74] : memref<8x128xf32, #tpu.memory_space<vmem>>, vector<8x128xf32>
        tpu.vector_store %arg6[%c0_73, %c0_74], %210 {strides = array<i32>} : memref<8x128xf32, #tpu.memory_space<vmem>>, vector<8x128xf32>,
      }
      %c2_i32_11 = arith.constant 2 : i32
    } else {
    }
    return
  }
  func.func @transform_0(%arg0: i32, %arg1: i32) -> (i32, i32) {
    %c0_i32 = arith.constant 0 : i32
    return %arg0, %arg1 : i32, i32
  }
  func.func @transform_1(%arg0: i32, %arg1: i32) -> (i32, i32) {
    %c0_i32 = arith.constant 0 : i32
    return %arg0, %arg1 : i32, i32
  }
  func.func @transform_2(%arg0: i32, %arg1: i32) -> (i32, i32) {
    %c0_i32 = arith.constant 0 : i32
    return %arg0, %arg1 : i32, i32
  }
  func.func @transform_3(%arg0: i32, %arg1: i32) -> (i32, i32) {
    %c0_i32 = arith.constant 0 : i32
    return %arg0, %arg1 : i32, i32
  }
  func.func @transform_4(%arg0: i32, %arg1: i32) -> (i32, i32) {
    %c0_i32 = arith.constant 0 : i32
    return %arg0, %arg1 : i32, i32
  }
}

</mosaic_0001>

<llo_original>
// kernel: tpu_custom_call.1
$region0: #{tpu_custom_call.1}
  #allocation0 [shape = 'u32[]', space=smem, size = 0x4, offset = 0x4, fixed_abs, tag = 'smem constant byte address 0x4 - core index']
  #allocation1 [shape = 'u32[144,128]{1,0:T(1,128)}', space=vmem, size = 0x12000, scoped, tag = 'internal scratch']
  %s0 = inlined_call_operand.vmem [shape: f32[8,2744], index: 0, kind: input, shape index: {}]
  %s1 = inlined_call_operand.vmem [shape: s32[8,2744], index: 1, kind: input, shape index: {}]
  %s2 = inlined_call_operand.hbm [shape: f32[8,256], index: 2, kind: output, shape index: {0}]
  %s3 = inlined_call_operand.hbm [shape: f32[8,256], index: 3, kind: output, shape index: {1}]
  %s4 = inlined_call_operand.hbm [shape: f32[8,256], index: 4, kind: output, shape index: {2}]
  %5 = xla_tuple %s2, %s3, %s4
  %s6 = sld [smem:[#allocation0]]
  $region79: #{tpu_custom_call.1} parent=0
    _
  %s8 = ssub.s32 1, %s6
  %s9 = scalar_select 0, %s8, %s6
  $region1: #{tpu_custom_call.1} parent=0
    #allocation2 [shape = 'u8[8192]{0}', space=vmem, size = 0x2000, scoped, tag = 'output window, operand 0']
    #allocation3 [shape = 's32[2]{0}', space=sflag, size = 0x8, scoped, tag = 'scoped memory for tpu_custom_call.1']
    #allocation4 [shape = 'u8[8192]{0}', space=vmem, size = 0x2000, scoped, tag = 'output window, operand 1']
    #allocation5 [shape = 's32[2]{0}', space=sflag, size = 0x8, scoped, tag = 'scoped memory for tpu_custom_call.1']
    #allocation6 [shape = 'u8[8192]{0}', space=vmem, size = 0x2000, scoped, tag = 'output window, operand 2']
    %10 = vsyncpa [#allocation3], 0
    %s11 = scalar_lea.sflag [#allocation3], 1
    %12 = vsyncpa %s11, 0
    %13 = vsyncpa [#allocation5], 0
    %s14 = scalar_lea.sflag [#allocation5], 1
    %15 = vsyncpa %s14, 0
    loop: start=0, step=1, limit=4
    $region2: #{tpu_custom_call.1} parent=1 // loop_pre_header
      _
    $region3: #{tpu_custom_call.1} parent=1 // loop_header
      %s17 = sphi 0, %s21
      %p18 = scmp.ge.s32.totalorder %s17, 4
      %s24 = sphi 0, %s36
      %s25 = sphi 0, %s32
      %s26 = sphi 0, %s24
      %s27 = sphi 0, %s25
      %s28 = sphi 0, %s26
      %s29 = sphi 0, %s27
      %s41 = sphi 0, %s43
      %s44 = sphi 0, %s41
      %s45 = sphi 0, %s44
      %s61 = sphi 0, %s45
      %s69 = sphi 0, %s71
      %s72 = sphi 0, %s69
      %s73 = sphi 0, %s72
      %s89 = sphi 0, %s73
      %s97 = sphi 0, %s99
      %s100 = sphi 0, %s97
      %s101 = sphi 0, %s100
      %s117 = sphi 0, %s101
      %s125 = sphi 0, %s127
      %s128 = sphi 0, %s125
      %s129 = sphi 0, %s128
      %s145 = sphi 0, %s129
      %s153 = sphi 0, %s155
      %s156 = sphi 0, %s153
      %s157 = sphi 0, %s156
      %s173 = sphi 0, %s157
    $region4: #{tpu_custom_call.1} parent=1 // loop_header_branch
      %20 = sbr.rel (%p18) target = $region8
    $region5: #{tpu_custom_call.1} parent=1 // loop_body
      %s22 = ssub.s32 %s17, 1
      %s23 = ssub.s32 %s17, 2
      %s30 = sadd.s32 1, %s25
      %p31 = scmp.ge.s32.totalorder %s30, 2
      %s32 = scalar_select %p31, 0, %s30
      %s33 = sadd.s32 1, %s24
      %s34 = scalar_select %p31, %s33, %s24
      %p35 = scmp.ge.s32.totalorder %s34, 1
      %s36 = scalar_select %p35, 0, %s34
      %s37 = ssub.s32 %s24, %s36
      %s38 = ssub.s32 %s25, %s32
      %s39 = sor.u32 %s37, %s38
      %p40 = scmp.eq.s32.totalorder %s39, 0
      %s42 = sadd.s32 %s41, 1
      %s43 = scalar_select %p40, %s41, %s42
      %p46 = pneg %p40
      %p47 = scmp.eq.s32.totalorder %s17, 1
      %p48 = por %p46, %p47
      %p49 = scmp.ne.s32.totalorder %s41, %s44
      %p50 = scmp.eq.s32.totalorder %s17, 0
      %p51 = por %p49, %p50
      %p52 = scmp.ne.s32.totalorder %s41, %s44
      %p53 = scmp.eq.s32.totalorder %s22, 1
      %p54 = por %p52, %p53
      %p55 = scmp.ne.s32.totalorder %s44, %s45
      %p56 = scmp.eq.s32.totalorder %s22, 0
      %p57 = por %p55, %p56
      %p58 = scmp.ne.s32.totalorder %s44, %s45
      %p59 = scmp.eq.s32.totalorder %s23, 1
      %p60 = por %p58, %p59
      %p62 = scmp.ne.s32.totalorder %s45, %s61
      %p63 = scmp.eq.s32.totalorder %s23, 0
      %p64 = por %p62, %p63
      %s65 = ssub.s32 %s24, %s36
      %s66 = ssub.s32 %s25, %s32
      %s67 = sor.u32 %s65, %s66
      %p68 = scmp.eq.s32.totalorder %s67, 0
      %s70 = sadd.s32 %s69, 1
      %s71 = scalar_select %p68, %s69, %s70
      %p74 = pneg %p68
      %p75 = scmp.eq.s32.totalorder %s17, 1
      %p76 = por %p74, %p75
      %p77 = scmp.ne.s32.totalorder %s69, %s72
      %p78 = scmp.eq.s32.totalorder %s17, 0
      %p79 = por %p77, %p78
      %p80 = scmp.ne.s32.totalorder %s69, %s72
      %p81 = scmp.eq.s32.totalorder %s22, 1
      %p82 = por %p80, %p81
      %p83 = scmp.ne.s32.totalorder %s72, %s73
      %p84 = scmp.eq.s32.totalorder %s22, 0
      %p85 = por %p83, %p84
      %p86 = scmp.ne.s32.totalorder %s72, %s73
      %p87 = scmp.eq.s32.totalorder %s23, 1
      %p88 = por %p86, %p87
      %p90 = scmp.ne.s32.totalorder %s73, %s89
      %p91 = scmp.eq.s32.totalorder %s23, 0
      %p92 = por %p90, %p91
      %s93 = ssub.s32 %s24, %s36
      %s94 = ssub.s32 %s25, %s32
      %s95 = sor.u32 %s93, %s94
      %p96 = scmp.eq.s32.totalorder %s95, 0
      %s98 = sadd.s32 %s97, 1
      %s99 = scalar_select %p96, %s97, %s98
      %p102 = pneg %p96
      %p103 = scmp.eq.s32.totalorder %s17, 1
      %p104 = por %p102, %p103
      %p105 = scmp.ne.s32.totalorder %s97, %s100
      %p106 = scmp.eq.s32.totalorder %s17, 0
      %p107 = por %p105, %p106
      %p108 = scmp.ne.s32.totalorder %s97, %s100
      %p109 = scmp.eq.s32.totalorder %s22, 1
      %p110 = por %p108, %p109
      %p111 = scmp.ne.s32.totalorder %s100, %s101
      %p112 = scmp.eq.s32.totalorder %s22, 0
      %p113 = por %p111, %p112
      %p114 = scmp.ne.s32.totalorder %s100, %s101
      %p115 = scmp.eq.s32.totalorder %s23, 1
      %p116 = por %p114, %p115
      %p118 = scmp.ne.s32.totalorder %s101, %s117
      %p119 = scmp.eq.s32.totalorder %s23, 0
      %p120 = por %p118, %p119
      %s121 = ssub.s32 %s24, %s36
      %s122 = ssub.s32 %s25, %s32
      %s123 = sor.u32 %s121, %s122
      %p124 = scmp.eq.s32.totalorder %s123, 0
      %s126 = sadd.s32 %s125, 1
      %s127 = scalar_select %p124, %s125, %s126
      %p130 = pneg %p124
      %p131 = scmp.eq.s32.totalorder %s17, 1
      %p132 = por %p130, %p131
      %p133 = scmp.ne.s32.totalorder %s125, %s128
      %p134 = scmp.eq.s32.totalorder %s17, 0
      %p135 = por %p133, %p134
      %p136 = scmp.ne.s32.totalorder %s125, %s128
      %p137 = scmp.eq.s32.totalorder %s22, 1
      %p138 = por %p136, %p137
      %p139 = scmp.ne.s32.totalorder %s128, %s129
      %p140 = scmp.eq.s32.totalorder %s22, 0
      %p141 = por %p139, %p140
      %p142 = scmp.ne.s32.totalorder %s128, %s129
      %p143 = scmp.eq.s32.totalorder %s23, 1
      %p144 = por %p142, %p143
      %p146 = scmp.ne.s32.totalorder %s129, %s145
      %p147 = scmp.eq.s32.totalorder %s23, 0
      %p148 = por %p146, %p147
      %s149 = ssub.s32 %s24, %s36
      %s150 = ssub.s32 %s25, %s32
      %s151 = sor.u32 %s149, %s150
      %p152 = scmp.eq.s32.totalorder %s151, 0
      %s154 = sadd.s32 %s153, 1
      %s155 = scalar_select %p152, %s153, %s154
      %p158 = pneg %p152
      %p159 = scmp.eq.s32.totalorder %s17, 1
      %p160 = por %p158, %p159
      %p161 = scmp.ne.s32.totalorder %s153, %s156
      %p162 = scmp.eq.s32.totalorder %s17, 0
      %p163 = por %p161, %p162
      %p164 = scmp.ne.s32.totalorder %s153, %s156
      %p165 = scmp.eq.s32.totalorder %s22, 1
      %p166 = por %p164, %p165
      %p167 = scmp.ne.s32.totalorder %s156, %s157
      %p168 = scmp.eq.s32.totalorder %s22, 0
      %p169 = por %p167, %p168
      %p170 = scmp.ne.s32.totalorder %s156, %s157
      %p171 = scmp.eq.s32.totalorder %s23, 1
      %p172 = por %p170, %p171
      %p174 = scmp.ne.s32.totalorder %s157, %s173
      %p175 = scmp.eq.s32.totalorder %s23, 0
      %p176 = por %p174, %p175
      %p177 = scmp.le.s32.totalorder 1, %s17
      %p178 = scmp.lt.s32.totalorder %s17, 3
      %p179 = pnand %p177, %p178
      %p180 = pneg %p179
      // Predicated region
      $region9: #{tpu_custom_call.1} parent=5 // pred_check
        _
      $region10: #{tpu_custom_call.1} parent=5 // pred_check_branch
        %182 = sbr.rel (%p179) target = $region12
      $region11: #{tpu_custom_call.1} parent=5 // pred_region
        %s183 = ssub.s32 %s17, 1
      $region12: #{tpu_custom_call.1} parent=5 // pred_fallthru
        _
      %p184 = scmp.lt.s32.totalorder %s17, 2
      // Predicated region
      $region13: #{tpu_custom_call.1} parent=5 // pred_check
        %p185 = pneg %p184
      $region14: #{tpu_custom_call.1} parent=5 // pred_check_branch
        %187 = sbr.rel (%p185) target = $region16
      $region15: #{tpu_custom_call.1} parent=5 // pred_region
        // Predicated region
        $region17: #{tpu_custom_call.1} parent=15 // pred_check
          %p188 = pneg %p51
        $region18: #{tpu_custom_call.1} parent=15 // pred_check_branch
          %190 = sbr.rel (%p188) target = $region20
        $region19: #{tpu_custom_call.1} parent=15 // pred_region
          %s191 = smul.u32 16, %s25
          %s192 = ssub.s32 22, %s191
          %p193 = scmp.lt.s32.totalorder %s192, 16
          %s194 = scalar_select %p193, %s192, 16
          %s195 = smul.u32 128, %s194
          %p196 = scmp.lt.s32.totalorder %s24, 0
          %s197 = scalar_select %p196, %s24, 0
          %p198 = scmp.lt.s32.totalorder %s191, 21
          %s199 = scalar_select %p198, %s191, 21
          %s200 = smul.addr %s197, 22
          %s201 = sadd.s32 %s199, %s200
          %s202 = smul.addr %s201, 8
          %s203 = scalar_lea.vmem %s0, %s202
          %s204 = smul.u32 16, %s25
          %s205 = ssub.s32 22, %s204
          %p206 = scmp.lt.s32.totalorder %s205, 16
          %s207 = scalar_select %p206, %s205, 16
          %s208 = smul.u32 128, %s207
        $region20: #{tpu_custom_call.1} parent=15 // pred_fallthru
          _
        // Predicated region
        $region21: #{tpu_custom_call.1} parent=15 // pred_check
          %p209 = pneg %p79
        $region22: #{tpu_custom_call.1} parent=15 // pred_check_branch
          %211 = sbr.rel (%p209) target = $region24
        $region23: #{tpu_custom_call.1} parent=15 // pred_region
          %s212 = smul.u32 16, %s25
          %s213 = ssub.s32 22, %s212
          %p214 = scmp.lt.s32.totalorder %s213, 16
          %s215 = scalar_select %p214, %s213, 16
          %s216 = smul.u32 128, %s215
          %p217 = scmp.lt.s32.totalorder %s24, 0
          %s218 = scalar_select %p217, %s24, 0
          %p219 = scmp.lt.s32.totalorder %s212, 21
          %s220 = scalar_select %p219, %s212, 21
          %s221 = smul.addr %s218, 22
          %s222 = sadd.s32 %s220, %s221
          %s223 = smul.addr %s222, 8
          %s224 = scalar_lea.vmem %s1, %s223
          %s225 = smul.u32 16, %s25
          %s226 = ssub.s32 22, %s225
          %p227 = scmp.lt.s32.totalorder %s226, 16
          %s228 = scalar_select %p227, %s226, 16
          %s229 = smul.u32 128, %s228
        $region24: #{tpu_custom_call.1} parent=15 // pred_fallthru
          _
      $region16: #{tpu_custom_call.1} parent=5 // pred_fallthru
        _
      %p230 = scmp.le.s32.totalorder 1, %s17
      %p231 = scmp.lt.s32.totalorder %s17, 3
      %p232 = pnand %p230, %p231
      %p233 = pneg %p232
      // Predicated region
      $region25: #{tpu_custom_call.1} parent=5 // pred_check
        _
      $region26: #{tpu_custom_call.1} parent=5 // pred_check_branch
        %235 = sbr.rel (%p232) target = $region28
      $region27: #{tpu_custom_call.1} parent=5 // pred_region
        %s236 = ssub.s32 %s17, 1
        %s237 = smul.u32 16, %s27
        %s238 = ssub.s32 22, %s237
        %p239 = scmp.lt.s32.totalorder %s238, 16
        %s240 = scalar_select %p239, %s238, 16
        %s241 = smul.u32 128, %s240
        %p242 = scmp.lt.s32.totalorder %s26, 0
        %s243 = scalar_select %p242, %s26, 0
        %p244 = scmp.lt.s32.totalorder %s237, 21
        %s245 = scalar_select %p244, %s237, 21
        %s246 = smul.addr %s243, 22
        %s247 = sadd.s32 %s245, %s246
        %s248 = smul.addr %s247, 8
        %s249 = scalar_lea.vmem %s0, %s248
        %p250 = pneg %p57
        %p251 = pneg %p54
        %s252 = smul.u32 16, %s27
        %s253 = ssub.s32 22, %s252
        %p254 = scmp.lt.s32.totalorder %s253, 16
        %s255 = scalar_select %p254, %s253, 16
        %s256 = smul.u32 128, %s255
        %p257 = scmp.lt.s32.totalorder %s26, 0
        %s258 = scalar_select %p257, %s26, 0
        %p259 = scmp.lt.s32.totalorder %s252, 21
        %s260 = scalar_select %p259, %s252, 21
        %s261 = smul.addr %s258, 22
        %s262 = sadd.s32 %s260, %s261
        %s263 = smul.addr %s262, 8
        %s264 = scalar_lea.vmem %s1, %s263
        %p265 = pneg %p85
        %p266 = pneg %p82
        %p267 = pneg %p113
        %p268 = pneg %p110
        %s269 = sand.u32 %s100, 1
        %s270 = scalar_lea.sflag [#allocation3], %s269
        %s271 = sand.u32 %s100, 1
        %s272 = smul.addr %s271, 8
        %s273 = scalar_lea.vmem [#allocation2], %s272
        %p274 = pneg %p141
        %p275 = pneg %p138
        %s276 = sand.u32 %s22, 1
        %s277 = scalar_lea.sflag [#allocation5], %s276
        %s278 = sand.u32 %s128, 1
        %s279 = smul.addr %s278, 8
        %s280 = scalar_lea.vmem [#allocation4], %s279
        %p281 = pneg %p169
        %p282 = pneg %p166
        %s283 = sand.u32 %s22, 1
        %s284 = scalar_lea.sflag [#allocation5], %s283
        %s285 = sand.u32 %s156, 1
        %s286 = smul.addr %s285, 8
        %s287 = scalar_lea.vmem [#allocation6], %s286
        %s288 = smul.u32 16, %s27
        %s289 = ssub.s32 22, %s288
        %p290 = scmp.lt.s32.totalorder %s289, 16
        %s291 = scalar_select %p290, %s289, 16
        %s292 = smul.u32 128, %s291
        %p293 = scmp.lt.s32.totalorder %s26, 0
        %s294 = scalar_select %p293, %s26, 0
        %p295 = scmp.lt.s32.totalorder %s288, 21
        %s296 = scalar_select %p295, %s288, 21
        %s297 = smul.addr %s294, 22
        %s298 = sadd.s32 %s296, %s297
        %s299 = smul.addr %s298, 8
        %s300 = scalar_lea.vmem %s0, %s299
        %s301 = smul.u32 16, %s27
        %s302 = ssub.s32 22, %s301
        %p303 = scmp.lt.s32.totalorder %s302, 16
        %s304 = scalar_select %p303, %s302, 16
        %s305 = smul.u32 128, %s304
        %s306 = smul.u32 16, %s27
        %s307 = ssub.s32 22, %s306
        %p308 = scmp.lt.s32.totalorder %s307, 16
        %s309 = scalar_select %p308, %s307, 16
        %s310 = smul.u32 128, %s309
        %p311 = scmp.lt.s32.totalorder %s26, 0
        %s312 = scalar_select %p311, %s26, 0
        %p313 = scmp.lt.s32.totalorder %s306, 21
        %s314 = scalar_select %p313, %s306, 21
        %s315 = smul.addr %s312, 22
        %s316 = sadd.s32 %s314, %s315
        %s317 = smul.addr %s316, 8
        %s318 = scalar_lea.vmem %s1, %s317
        %s319 = smul.u32 16, %s27
        %s320 = ssub.s32 22, %s319
        %p321 = scmp.lt.s32.totalorder %s320, 16
        %s322 = scalar_select %p321, %s320, 16
        %s323 = smul.u32 128, %s322
        %324 = vst [vmem:[%s273] sm:$0xff] 0.0
        %325 = vst [vmem:[%s280] sm:$0xff] 0.0
        %326 = vst [vmem:[%s287] sm:$0xff] 0.0
        %p327 = scmp.lt.s32.totalorder %s27, 1
        // Predicated region
        $region29: #{tpu_custom_call.1} parent=27 // pred_check
          %p328 = pneg %p327
        $region30: #{tpu_custom_call.1} parent=27 // pred_check_branch
          %330 = sbr.rel (%p328) target = $region32
        $region31: #{tpu_custom_call.1} parent=27 // pred_region
          loop: start=0, step=1, limit=2
          $region33: #{tpu_custom_call.1} parent=31 // loop_pre_header
            _
          $region34: #{tpu_custom_call.1} parent=31 // loop_header
            %s332 = sphi 0, %s336
            %p333 = scmp.ge.s32.totalorder %s332, 2
          $region35: #{tpu_custom_call.1} parent=31 // loop_header_branch
            %335 = sbr.rel (%p333) target = $region39
          $region36: #{tpu_custom_call.1} parent=31 // loop_body
            %s337 = smul.u32 %s332, 1024
            %s338 = sshra.s32 %s337, 7
            %s339 = sand.u32 %s337, 127
            %s340 = smul.addr %s338, 8
            %s341 = scalar_lea.vmem %s300, %s340
            %v342 = vld [vmem:[%s341] sm:$0xff]
            %s343 = smul.addr %s338, 8
            %s344 = scalar_lea.vmem %s318, %s343
            %v345 = vld [vmem:[%s344] sm:$0xff]
            %vm346 = vcmp.ne.s32.totalorder %v345, 0
            %v347 = vsel %vm346, 1, 0
            %v348 = vcvt.s32.f32 %v347
            %v349 = vsub.f32 %v342, %v348
            %v350 = vmul.f32 %v349, %v349
            %v351 = vadd.f32 %v348, 0.0
            %v352 = vadd.f32 %v350, 0.0
            %v353 = vmul.f32 %v350, %v348
            %v354 = vadd.f32 %v353, 0.0
            %s355 = sadd.s32 %s337, 128
            %s356 = sshra.s32 %s355, 7
            %s357 = sand.u32 %s355, 127
            %s358 = smul.addr %s356, 8
            %s359 = scalar_lea.vmem %s300, %s358
            %v360 = vld [vmem:[%s359] sm:$0xff]
            %s361 = smul.addr %s356, 8
            %s362 = scalar_lea.vmem %s318, %s361
            %v363 = vld [vmem:[%s362] sm:$0xff]
            %vm364 = vcmp.ne.s32.totalorder %v363, 0
            %v365 = vsel %vm364, 1, 0
            %v366 = vcvt.s32.f32 %v365
            %v367 = vsub.f32 %v360, %v366
            %v368 = vmul.f32 %v367, %v367
            %v369 = vadd.f32 %v351, %v366
            %v370 = vadd.f32 %v352, %v368
            %v371 = vmul.f32 %v368, %v366
            %v372 = vadd.f32 %v354, %v371
            %s373 = sadd.s32 %s337, 256
            %s374 = sshra.s32 %s373, 7
            %s375 = sand.u32 %s373, 127
            %s376 = smul.addr %s374, 8
            %s377 = scalar_lea.vmem %s300, %s376
            %v378 = vld [vmem:[%s377] sm:$0xff]
            %s379 = smul.addr %s374, 8
            %s380 = scalar_lea.vmem %s318, %s379
            %v381 = vld [vmem:[%s380] sm:$0xff]
            %vm382 = vcmp.ne.s32.totalorder %v381, 0
            %v383 = vsel %vm382, 1, 0
            %v384 = vcvt.s32.f32 %v383
            %v385 = vsub.f32 %v378, %v384
            %v386 = vmul.f32 %v385, %v385
            %v387 = vadd.f32 %v369, %v384
            %v388 = vadd.f32 %v370, %v386
            %v389 = vmul.f32 %v386, %v384
            %v390 = vadd.f32 %v372, %v389
            %s391 = sadd.s32 %s337, 384
            %s392 = sshra.s32 %s391, 7
            %s393 = sand.u32 %s391, 127
            %s394 = smul.addr %s392, 8
            %s395 = scalar_lea.vmem %s300, %s394
            %v396 = vld [vmem:[%s395] sm:$0xff]
            %s397 = smul.addr %s392, 8
            %s398 = scalar_lea.vmem %s318, %s397
            %v399 = vld [vmem:[%s398] sm:$0xff]
            %vm400 = vcmp.ne.s32.totalorder %v399, 0
            %v401 = vsel %vm400, 1, 0
            %v402 = vcvt.s32.f32 %v401
            %v403 = vsub.f32 %v396, %v402
            %v404 = vmul.f32 %v403, %v403
            %v405 = vadd.f32 %v387, %v402
            %v406 = vadd.f32 %v388, %v404
            %v407 = vmul.f32 %v404, %v402
            %v408 = vadd.f32 %v390, %v407
            %s409 = sadd.s32 %s337, 512
            %s410 = sshra.s32 %s409, 7
            %s411 = sand.u32 %s409, 127
            %s412 = smul.addr %s410, 8
            %s413 = scalar_lea.vmem %s300, %s412
            %v414 = vld [vmem:[%s413] sm:$0xff]
            %s415 = smul.addr %s410, 8
            %s416 = scalar_lea.vmem %s318, %s415
            %v417 = vld [vmem:[%s416] sm:$0xff]
            %vm418 = vcmp.ne.s32.totalorder %v417, 0
            %v419 = vsel %vm418, 1, 0
            %v420 = vcvt.s32.f32 %v419
            %v421 = vsub.f32 %v414, %v420
            %v422 = vmul.f32 %v421, %v421
            %v423 = vadd.f32 %v405, %v420
            %v424 = vadd.f32 %v406, %v422
            %v425 = vmul.f32 %v422, %v420
            %v426 = vadd.f32 %v408, %v425
            %s427 = sadd.s32 %s337, 640
            %s428 = sshra.s32 %s427, 7
            %s429 = sand.u32 %s427, 127
            %s430 = smul.addr %s428, 8
            %s431 = scalar_lea.vmem %s300, %s430
            %v432 = vld [vmem:[%s431] sm:$0xff]
            %s433 = smul.addr %s428, 8
            %s434 = scalar_lea.vmem %s318, %s433
            %v435 = vld [vmem:[%s434] sm:$0xff]
            %vm436 = vcmp.ne.s32.totalorder %v435, 0
            %v437 = vsel %vm436, 1, 0
            %v438 = vcvt.s32.f32 %v437
            %v439 = vsub.f32 %v432, %v438
            %v440 = vmul.f32 %v439, %v439
            %v441 = vadd.f32 %v423, %v438
            %v442 = vadd.f32 %v424, %v440
            %v443 = vmul.f32 %v440, %v438
            %v444 = vadd.f32 %v426, %v443
            %s445 = sadd.s32 %s337, 768
            %s446 = sshra.s32 %s445, 7
            %s447 = sand.u32 %s445, 127
            %s448 = smul.addr %s446, 8
            %s449 = scalar_lea.vmem %s300, %s448
            %v450 = vld [vmem:[%s449] sm:$0xff]
            %s451 = smul.addr %s446, 8
            %s452 = scalar_lea.vmem %s318, %s451
            %v453 = vld [vmem:[%s452] sm:$0xff]
            %vm454 = vcmp.ne.s32.totalorder %v453, 0
            %v455 = vsel %vm454, 1, 0
            %v456 = vcvt.s32.f32 %v455
            %v457 = vsub.f32 %v450, %v456
            %v458 = vmul.f32 %v457, %v457
            %v459 = vadd.f32 %v441, %v456
            %v460 = vadd.f32 %v442, %v458
            %v461 = vmul.f32 %v458, %v456
            %v462 = vadd.f32 %v444, %v461
            %s463 = sadd.s32 %s337, 896
            %s464 = sshra.s32 %s463, 7
            %s465 = sand.u32 %s463, 127
            %s466 = smul.addr %s464, 8
            %s467 = scalar_lea.vmem %s300, %s466
            %v468 = vld [vmem:[%s467] sm:$0xff]
            %s469 = smul.addr %s464, 8
            %s470 = scalar_lea.vmem %s318, %s469
            %v471 = vld [vmem:[%s470] sm:$0xff]
            %vm472 = vcmp.ne.s32.totalorder %v471, 0
            %v473 = vsel %vm472, 1, 0
            %v474 = vcvt.s32.f32 %v473
            %v475 = vsub.f32 %v468, %v474
            %v476 = vmul.f32 %v475, %v475
            %v477 = vadd.f32 %v459, %v474
            %v478 = vadd.f32 %v460, %v476
            %v479 = vmul.f32 %v476, %v474
            %v480 = vadd.f32 %v462, %v479
            %v481 = vld [vmem:[%s273] sm:$0xff]
            %v482 = vadd.f32 %v481, %v477
            %483 = vst [vmem:[%s273] sm:$0xff] %v482
            %v484 = vld [vmem:[%s280] sm:$0xff]
            %v485 = vadd.f32 %v484, %v478
            %486 = vst [vmem:[%s280] sm:$0xff] %v485
            %v487 = vld [vmem:[%s287] sm:$0xff]
            %v488 = vadd.f32 %v487, %v480
            %489 = vst [vmem:[%s287] sm:$0xff] %v488
          $region37: #{tpu_custom_call.1} parent=31 // loop_footer
            %s336 = sadd.s32 1, %s332
          $region38: #{tpu_custom_call.1} parent=31 // loop_footer_branch
            %331 = sbr.rel target = $region34
          $region39: #{tpu_custom_call.1} parent=31 // loop_exit
            _
        $region32: #{tpu_custom_call.1} parent=27 // pred_fallthru
          _
        %p490 = scmp.eq.s32.totalorder %s27, 1
        // Predicated region
        $region40: #{tpu_custom_call.1} parent=27 // pred_check
          %p491 = pneg %p490
        $region41: #{tpu_custom_call.1} parent=27 // pred_check_branch
          %493 = sbr.rel (%p491) target = $region43
        $region42: #{tpu_custom_call.1} parent=27 // pred_region
          %v494 = vlaneseq
          %v495 = vand.u32 %v494, 127
          %s496 = smul.u32 %s27, 2048
          %s497 = ssub.s32 2744, %s496
          loop: start=0, step=1, limit=2
          $region44: #{tpu_custom_call.1} parent=42 // loop_pre_header
            _
          $region45: #{tpu_custom_call.1} parent=42 // loop_header
            %s499 = sphi 0, %s503
            %p500 = scmp.ge.s32.totalorder %s499, 2
          $region46: #{tpu_custom_call.1} parent=42 // loop_header_branch
            %502 = sbr.rel (%p500) target = $region50
          $region47: #{tpu_custom_call.1} parent=42 // loop_body
            %s504 = smul.u32 %s499, 1024
            %s505 = sshra.s32 %s504, 7
            %s506 = sand.u32 %s504, 127
            %s507 = smul.addr %s505, 8
            %s508 = scalar_lea.vmem %s300, %s507
            %v509 = vld [vmem:[%s508] sm:$0xff]
            %s510 = smul.addr %s505, 8
            %s511 = scalar_lea.vmem %s318, %s510
            %v512 = vld [vmem:[%s511] sm:$0xff]
            %vm513 = vcmp.ne.s32.totalorder %v512, 0
            %v514 = vsel %vm513, 1, 0
            %v515 = vcvt.s32.f32 %v514
            %v516 = vsub.f32 %v509, %v515
            %v517 = vmul.f32 %v516, %v516
            %s518 = ssub.s32 %s497, %s504
            %v519 = vstv %s518
            %vm520 = vcmp.lt.s32.totalorder %v495, %v519
            %v521 = vsel %vm520, %v515, 0.0
            %v522 = vsel %vm520, %v517, 0.0
            %v523 = vadd.f32 %v521, 0.0
            %v524 = vadd.f32 %v522, 0.0
            %v525 = vmul.f32 %v522, %v521
            %v526 = vadd.f32 %v525, 0.0
            %s527 = sadd.s32 %s504, 128
            %s528 = sshra.s32 %s527, 7
            %s529 = sand.u32 %s527, 127
            %s530 = smul.addr %s528, 8
            %s531 = scalar_lea.vmem %s300, %s530
            %v532 = vld [vmem:[%s531] sm:$0xff]
            %s533 = smul.addr %s528, 8
            %s534 = scalar_lea.vmem %s318, %s533
            %v535 = vld [vmem:[%s534] sm:$0xff]
            %vm536 = vcmp.ne.s32.totalorder %v535, 0
            %v537 = vsel %vm536, 1, 0
            %v538 = vcvt.s32.f32 %v537
            %v539 = vsub.f32 %v532, %v538
            %v540 = vmul.f32 %v539, %v539
            %s541 = ssub.s32 %s497, %s527
            %v542 = vstv %s541
            %vm543 = vcmp.lt.s32.totalorder %v495, %v542
            %v544 = vsel %vm543, %v538, 0.0
            %v545 = vsel %vm543, %v540, 0.0
            %v546 = vadd.f32 %v523, %v544
            %v547 = vadd.f32 %v524, %v545
            %v548 = vmul.f32 %v545, %v544
            %v549 = vadd.f32 %v526, %v548
            %s550 = sadd.s32 %s504, 256
            %s551 = sshra.s32 %s550, 7
            %s552 = sand.u32 %s550, 127
            %s553 = smul.addr %s551, 8
            %s554 = scalar_lea.vmem %s300, %s553
            %v555 = vld [vmem:[%s554] sm:$0xff]
            %s556 = smul.addr %s551, 8
            %s557 = scalar_lea.vmem %s318, %s556
            %v558 = vld [vmem:[%s557] sm:$0xff]
            %vm559 = vcmp.ne.s32.totalorder %v558, 0
            %v560 = vsel %vm559, 1, 0
            %v561 = vcvt.s32.f32 %v560
            %v562 = vsub.f32 %v555, %v561
            %v563 = vmul.f32 %v562, %v562
            %s564 = ssub.s32 %s497, %s550
            %v565 = vstv %s564
            %vm566 = vcmp.lt.s32.totalorder %v495, %v565
            %v567 = vsel %vm566, %v561, 0.0
            %v568 = vsel %vm566, %v563, 0.0
            %v569 = vadd.f32 %v546, %v567
            %v570 = vadd.f32 %v547, %v568
            %v571 = vmul.f32 %v568, %v567
            %v572 = vadd.f32 %v549, %v571
            %s573 = sadd.s32 %s504, 384
            %s574 = sshra.s32 %s573, 7
            %s575 = sand.u32 %s573, 127
            %s576 = smul.addr %s574, 8
            %s577 = scalar_lea.vmem %s300, %s576
            %v578 = vld [vmem:[%s577] sm:$0xff]
            %s579 = smul.addr %s574, 8
            %s580 = scalar_lea.vmem %s318, %s579
            %v581 = vld [vmem:[%s580] sm:$0xff]
            %vm582 = vcmp.ne.s32.totalorder %v581, 0
            %v583 = vsel %vm582, 1, 0
            %v584 = vcvt.s32.f32 %v583
            %v585 = vsub.f32 %v578, %v584
            %v586 = vmul.f32 %v585, %v585
            %s587 = ssub.s32 %s497, %s573
            %v588 = vstv %s587
            %vm589 = vcmp.lt.s32.totalorder %v495, %v588
            %v590 = vsel %vm589, %v584, 0.0
            %v591 = vsel %vm589, %v586, 0.0
            %v592 = vadd.f32 %v569, %v590
            %v593 = vadd.f32 %v570, %v591
            %v594 = vmul.f32 %v591, %v590
            %v595 = vadd.f32 %v572, %v594
            %s596 = sadd.s32 %s504, 512
            %s597 = sshra.s32 %s596, 7
            %s598 = sand.u32 %s596, 127
            %s599 = smul.addr %s597, 8
            %s600 = scalar_lea.vmem %s300, %s599
            %v601 = vld [vmem:[%s600] sm:$0xff]
            %s602 = smul.addr %s597, 8
            %s603 = scalar_lea.vmem %s318, %s602
            %v604 = vld [vmem:[%s603] sm:$0xff]
            %vm605 = vcmp.ne.s32.totalorder %v604, 0
            %v606 = vsel %vm605, 1, 0
            %v607 = vcvt.s32.f32 %v606
            %v608 = vsub.f32 %v601, %v607
            %v609 = vmul.f32 %v608, %v608
            %s610 = ssub.s32 %s497, %s596
            %v611 = vstv %s610
            %vm612 = vcmp.lt.s32.totalorder %v495, %v611
            %v613 = vsel %vm612, %v607, 0.0
            %v614 = vsel %vm612, %v609, 0.0
            %v615 = vadd.f32 %v592, %v613
            %v616 = vadd.f32 %v593, %v614
            %v617 = vmul.f32 %v614, %v613
            %v618 = vadd.f32 %v595, %v617
            %s619 = sadd.s32 %s504, 640
            %s620 = sshra.s32 %s619, 7
            %s621 = sand.u32 %s619, 127
            %s622 = smul.addr %s620, 8
            %s623 = scalar_lea.vmem %s300, %s622
            %v624 = vld [vmem:[%s623] sm:$0xff]
            %s625 = smul.addr %s620, 8
            %s626 = scalar_lea.vmem %s318, %s625
            %v627 = vld [vmem:[%s626] sm:$0xff]
            %vm628 = vcmp.ne.s32.totalorder %v627, 0
            %v629 = vsel %vm628, 1, 0
            %v630 = vcvt.s32.f32 %v629
            %v631 = vsub.f32 %v624, %v630
            %v632 = vmul.f32 %v631, %v631
            %s633 = ssub.s32 %s497, %s619
            %v634 = vstv %s633
            %vm635 = vcmp.lt.s32.totalorder %v495, %v634
            %v636 = vsel %vm635, %v630, 0.0
            %v637 = vsel %vm635, %v632, 0.0
            %v638 = vadd.f32 %v615, %v636
            %v639 = vadd.f32 %v616, %v637
            %v640 = vmul.f32 %v637, %v636
            %v641 = vadd.f32 %v618, %v640
            %s642 = sadd.s32 %s504, 768
            %s643 = sshra.s32 %s642, 7
            %s644 = sand.u32 %s642, 127
            %s645 = smul.addr %s643, 8
            %s646 = scalar_lea.vmem %s300, %s645
            %v647 = vld [vmem:[%s646] sm:$0xff]
            %s648 = smul.addr %s643, 8
            %s649 = scalar_lea.vmem %s318, %s648
            %v650 = vld [vmem:[%s649] sm:$0xff]
            %vm651 = vcmp.ne.s32.totalorder %v650, 0
            %v652 = vsel %vm651, 1, 0
            %v653 = vcvt.s32.f32 %v652
            %v654 = vsub.f32 %v647, %v653
            %v655 = vmul.f32 %v654, %v654
            %s656 = ssub.s32 %s497, %s642
            %v657 = vstv %s656
            %vm658 = vcmp.lt.s32.totalorder %v495, %v657
            %v659 = vsel %vm658, %v653, 0.0
            %v660 = vsel %vm658, %v655, 0.0
            %v661 = vadd.f32 %v638, %v659
            %v662 = vadd.f32 %v639, %v660
            %v663 = vmul.f32 %v660, %v659
            %v664 = vadd.f32 %v641, %v663
            %s665 = sadd.s32 %s504, 896
            %s666 = sshra.s32 %s665, 7
            %s667 = sand.u32 %s665, 127
            %s668 = smul.addr %s666, 8
            %s669 = scalar_lea.vmem %s300, %s668
            %v670 = vld [vmem:[%s669] sm:$0xff]
            %s671 = smul.addr %s666, 8
            %s672 = scalar_lea.vmem %s318, %s671
            %v673 = vld [vmem:[%s672] sm:$0xff]
            %vm674 = vcmp.ne.s32.totalorder %v673, 0
            %v675 = vsel %vm674, 1, 0
            %v676 = vcvt.s32.f32 %v675
            %v677 = vsub.f32 %v670, %v676
            %v678 = vmul.f32 %v677, %v677
            %s679 = ssub.s32 %s497, %s665
            %v680 = vstv %s679
            %vm681 = vcmp.lt.s32.totalorder %v495, %v680
            %v682 = vsel %vm681, %v676, 0.0
            %v683 = vsel %vm681, %v678, 0.0
            %v684 = vadd.f32 %v661, %v682
            %v685 = vadd.f32 %v662, %v683
            %v686 = vmul.f32 %v683, %v682
            %v687 = vadd.f32 %v664, %v686
            %v688 = vld [vmem:[%s273] sm:$0xff]
            %v689 = vadd.f32 %v688, %v684
            %690 = vst [vmem:[%s273] sm:$0xff] %v689
            %v691 = vld [vmem:[%s280] sm:$0xff]
            %v692 = vadd.f32 %v691, %v685
            %693 = vst [vmem:[%s280] sm:$0xff] %v692
            %v694 = vld [vmem:[%s287] sm:$0xff]
            %v695 = vadd.f32 %v694, %v687
            %696 = vst [vmem:[%s287] sm:$0xff] %v695
          $region48: #{tpu_custom_call.1} parent=42 // loop_footer
            %s503 = sadd.s32 1, %s499
          $region49: #{tpu_custom_call.1} parent=42 // loop_footer_branch
            %498 = sbr.rel target = $region45
          $region50: #{tpu_custom_call.1} parent=42 // loop_exit
            _
        $region43: #{tpu_custom_call.1} parent=27 // pred_fallthru
          _
        %s697 = sand.u32 %s100, 1
        %s698 = scalar_lea.sflag [#allocation3], %s697
        %s699 = sand.u32 %s100, 1
        %s700 = smul.addr %s699, 8
        %s701 = scalar_lea.vmem [#allocation2], %s700
        %s702 = sand.u32 %s22, 1
        %s703 = scalar_lea.sflag [#allocation5], %s702
        %s704 = sand.u32 %s128, 1
        %s705 = smul.addr %s704, 8
        %s706 = scalar_lea.vmem [#allocation4], %s705
        %s707 = sand.u32 %s22, 1
        %s708 = scalar_lea.sflag [#allocation5], %s707
        %s709 = sand.u32 %s156, 1
        %s710 = smul.addr %s709, 8
        %s711 = scalar_lea.vmem [#allocation6], %s710
        // Predicated region
        $region51: #{tpu_custom_call.1} parent=27 // pred_check
          %p712 = pneg %p110
        $region52: #{tpu_custom_call.1} parent=27 // pred_check_branch
          %714 = sbr.rel (%p712) target = $region54
        $region53: #{tpu_custom_call.1} parent=27 // pred_region
          %s716 = ssub.s32 128, 128
          %717 = vsyncadd %s698, %s716
          %s718 = smul.addr %s26, 2
          %s719 = sadd.s32 %s27, %s718
          %s720 = smul.addr %s719, 128
          %s721 = scalar_lea.hbm %s2, %s720
          %s723 = sshll.u32 %s701, 4
          %s724 = int_to_ptr.vmem [resolvable:$true] %s723
          %726 = dma.vmem_to_hbm [thread:$0]  %s724, 128, %s721, %s698
        $region54: #{tpu_custom_call.1} parent=27 // pred_fallthru
          _
        // Predicated region
        $region55: #{tpu_custom_call.1} parent=27 // pred_check
          %p727 = pneg %p138
        $region56: #{tpu_custom_call.1} parent=27 // pred_check_branch
          %729 = sbr.rel (%p727) target = $region58
        $region57: #{tpu_custom_call.1} parent=27 // pred_region
          %s731 = ssub.s32 128, 128
          %732 = vsyncadd %s703, %s731
          %s733 = smul.addr %s26, 2
          %s734 = sadd.s32 %s27, %s733
          %s735 = smul.addr %s734, 128
          %s736 = scalar_lea.hbm %s3, %s735
          %s738 = sshll.u32 %s706, 4
          %s739 = int_to_ptr.vmem [resolvable:$true] %s738
          %741 = dma.vmem_to_hbm [thread:$0]  %s739, 128, %s736, %s703
        $region58: #{tpu_custom_call.1} parent=27 // pred_fallthru
          _
        // Predicated region
        $region59: #{tpu_custom_call.1} parent=27 // pred_check
          %p742 = pneg %p166
        $region60: #{tpu_custom_call.1} parent=27 // pred_check_branch
          %744 = sbr.rel (%p742) target = $region62
        $region61: #{tpu_custom_call.1} parent=27 // pred_region
          %s746 = ssub.s32 128, 128
          %747 = vsyncadd %s708, %s746
          %s748 = smul.addr %s26, 2
          %s749 = sadd.s32 %s27, %s748
          %s750 = smul.addr %s749, 128
          %s751 = scalar_lea.hbm %s4, %s750
          %s753 = sshll.u32 %s711, 4
          %s754 = int_to_ptr.vmem [resolvable:$true] %s753
          %756 = dma.vmem_to_hbm [thread:$0]  %s754, 128, %s751, %s708
        $region62: #{tpu_custom_call.1} parent=27 // pred_fallthru
          _
      $region28: #{tpu_custom_call.1} parent=5 // pred_fallthru
        _
      %p757 = scmp.le.s32.totalorder 2, %s17
      // Predicated region
      $region63: #{tpu_custom_call.1} parent=5 // pred_check
        %p758 = pneg %p757
      $region64: #{tpu_custom_call.1} parent=5 // pred_check_branch
        %760 = sbr.rel (%p758) target = $region66
      $region65: #{tpu_custom_call.1} parent=5 // pred_region
        %s761 = ssub.s32 %s17, 2
        // Predicated region
        $region67: #{tpu_custom_call.1} parent=65 // pred_check
          %p762 = pneg %p116
        $region68: #{tpu_custom_call.1} parent=65 // pred_check_branch
          %764 = sbr.rel (%p762) target = $region70
        $region69: #{tpu_custom_call.1} parent=65 // pred_region
          %s765 = sand.u32 %s101, 1
          %s766 = scalar_lea.sflag [#allocation3], %s765
          %s767 = sand.u32 %s101, 1
          %s768 = smul.addr %s767, 8
          %s769 = scalar_lea.vmem [#allocation2], %s768
          %770 = dma.done %s766, 128
        $region70: #{tpu_custom_call.1} parent=65 // pred_fallthru
          _
        // Predicated region
        $region71: #{tpu_custom_call.1} parent=65 // pred_check
          %p771 = pneg %p144
        $region72: #{tpu_custom_call.1} parent=65 // pred_check_branch
          %773 = sbr.rel (%p771) target = $region74
        $region73: #{tpu_custom_call.1} parent=65 // pred_region
          %s774 = sand.u32 %s23, 1
          %s775 = scalar_lea.sflag [#allocation5], %s774
          %s776 = sand.u32 %s129, 1
          %s777 = smul.addr %s776, 8
          %s778 = scalar_lea.vmem [#allocation4], %s777
          %779 = dma.done %s775, 128
        $region74: #{tpu_custom_call.1} parent=65 // pred_fallthru
          _
        // Predicated region
        $region75: #{tpu_custom_call.1} parent=65 // pred_check
          %p780 = pneg %p172
        $region76: #{tpu_custom_call.1} parent=65 // pred_check_branch
          %782 = sbr.rel (%p780) target = $region78
        $region77: #{tpu_custom_call.1} parent=65 // pred_region
          %s783 = sand.u32 %s23, 1
          %s784 = scalar_lea.sflag [#allocation5], %s783
          %s785 = sand.u32 %s157, 1
          %s786 = smul.addr %s785, 8
          %s787 = scalar_lea.vmem [#allocation6], %s786
          %788 = dma.done %s784, 128
        $region78: #{tpu_custom_call.1} parent=65 // pred_fallthru
          _
      $region66: #{tpu_custom_call.1} parent=5 // pred_fallthru
        _
    $region6: #{tpu_custom_call.1} parent=1 // loop_footer
      %s21 = sadd.s32 1, %s17
    $region7: #{tpu_custom_call.1} parent=1 // loop_footer_branch
      %16 = sbr.rel target = $region3
    $region8: #{tpu_custom_call.1} parent=1 // loop_exit
      _
    %789 = vsyncpa [#allocation3], 1
    %s790 = scalar_lea.sflag [#allocation3], 1
    %791 = vsyncpa %s790, 1
    %792 = vsyncpa [#allocation5], 1
    %s793 = scalar_lea.sflag [#allocation5], 1
    %794 = vsyncpa %s793, 1

</llo_original>
